<compile_context>
chip_gen: v6e
topology: v6e:2x2x1
jax: 0.10.0
libtpu: 0.0.40
codegen_flags: <defaults>
</compile_context>

<pallas_src>
import functools

import jax
import jax.numpy as jnp
from jax.experimental import pallas as pl
from jax.experimental.pallas import tpu as pltpu

BN_EPS = 1e-5
LANE = 128            # lane-dense output-channel padding
MAX_TM = 256          # max output rows per grid step (multiple of 16)


def _round_up(x, m):
    return (x + m - 1) // m * m


@functools.lru_cache(maxsize=1)
def _vmem_limit_bytes():
    cap = 64 * 1024 * 1024                      # safe default = v7x physical VMEM
    try:
        cap = int(pltpu.get_tpu_info().vmem_capacity_bytes)
    except Exception:
        pass
    # ~3/4 of physical, capped: 128 MiB parts (v5e/v6e) -> 96-100 MiB, v7x -> 48 MiB.
    return int(min(cap * 3 // 4, 100 * 1024 * 1024))


# ------------------------------- Pallas kernel ------------------------------ #
def _conv_bn_kernel(taps, n_tiles, relu, res_mode, *refs):
    """One (TM, Coutp) output tile of: 3x3 conv + folded-BN affine (+ residual) (+ ReLU).

    refs per res_mode:
      "none": x, w, scale, shift, out
      "add" : x, w, scale, shift, res, out          (identity skip, added in f32)
      "proj": x, w, scale, shift, res, wres, out    (1x1-conv residual as a 2nd dot)

    x_ref:       (P, S_rows, Cin) bf16  stride-phase slab of one image (P = stride**2)
    w_ref:       (9*Cin, Coutp)   bf16  tap-major packed conv weights
    scale/shift: (1, Coutp)       f32   folded BatchNorm affine (+ residual bias)
    out_ref:     (TM, Coutp)
    """
    if res_mode == "none":
        x_ref, w_ref, scale_ref, shift_ref, out_ref = refs
    elif res_mode == "add":
        x_ref, w_ref, scale_ref, shift_ref, res_ref, out_ref = refs
    else:  # "proj"
        x_ref, w_ref, scale_ref, shift_ref, res_ref, wres_ref, out_ref = refs

    tm = out_ref.shape[0]
    if n_tiles == 1:
        row0 = 0                                            # fully static tap offsets
    else:
        row0 = pl.multiple_of(pl.program_id(1) * tm, 8)     # tm is a multiple of 16

    # Gather the 9 shifted taps and lane-concatenate them into the (TM, 9*Cin) patch:
    # one fused K = 9*Cin MXU matmul instead of 9 shallow K = Cin dots.
    # (Concat is done in 32-bit and cast back; values are exact either way.)
    parts = [x_ref[p, pl.ds(row0 + off, tm), :].astype(jnp.float32) for p, off in taps]
    patch = jnp.concatenate(parts, axis=-1).astype(jnp.bfloat16)
    acc = jnp.dot(patch, w_ref[...], preferred_element_type=jnp.float32)

    y = acc * scale_ref[...] + shift_ref[...]                # BN affine, f32
    if res_mode == "add":
        y = y + res_ref[...]                                 # identity skip stays f32
    elif res_mode == "proj":
        y = y + jnp.dot(res_ref[...], wres_ref[...], preferred_element_type=jnp.float32)
    if relu:
        y = jnp.maximum(y, 0.0)
    out_ref[...] = y.astype(out_ref.dtype)


# ------------------------------- fused driver ------------------------------- #
def fused_conv3x3_bn(x_nhwc, w_oihw, scale, shift, *, stride, relu=True,
                     res_mode="none", residual=None, wres=None,
                     out_dtype=jnp.float32):
    """3x3 conv (padding=1, `stride`) + folded-BN affine [+ residual] [+ ReLU].

    x_nhwc:   (N, H, W, Cin)
    w_oihw:   (Cout, Cin, 3, 3)
    scale:    (Cout,) per-channel multiplier (gamma / sqrt(var+eps))
    shift:    (Cout,) per-channel additive term (conv bias / BN [+ residual bias] folded)
    residual: res_mode=="add" : (N, Ho, Wo, Cout) identity-skip operand (added in f32)
              res_mode=="proj": (N, Ho, Wo, Cres) 1x1-conv operand, wres: (Cres, Cout)
    Returns (N, Ho, Wo, Cout) in out_dtype.
    """
    assert stride in (1, 2), "ResNet blocks use stride 1 or 2"
    n, h, w, cin = x_nhwc.shape
    cout = w_oihw.shape[0]
    s = stride
    ho = (h - 1) // s + 1
    wo = (w - 1) // s + 1
    # lane-dense output channels: 256-wide for wide layers (fills the 2x256 MXU output
    # dim on v6e/v7x), plain 128 otherwise (and for v5e-sized layers).
    coutp = _round_up(cout, 256) if cout > LANE else _round_up(cout, LANE)

    wq = -(-(w + 2) // s)                 # padded width in output/dense coords
    d = 2 // s                            # max tap offset per axis in dense coords
    max_off = d * wq + d
    md = ho * wq                          # dense rows covering every valid output pixel

    # M tiling (grid axis 1); tm is a multiple of 16 -> aligned blocks & unmasked stores.
    n_tiles = max(1, -(-md // MAX_TM))
    tm = _round_up(-(-md // n_tiles), 16)
    n_tiles = -(-md // tm)
    padded_md = n_tiles * tm

    # per-image slab rows (dense coords) including the tap read halo
    s_rows = _round_up(padded_md + max_off, 8)
    hq = -(-s_rows // wq)                 # image rows needed (dense coords)
    hp, wp = hq * s, wq * s               # padded input extent

    xb = x_nhwc.astype(jnp.bfloat16)
    xp = jnp.pad(xb, ((0, 0), (1, hp - h - 1), (1, wp - w - 1), (0, 0)))
    if s == 1:
        slab = xp.reshape(n, 1, hp * wp, cin)             # no space-to-depth needed
    else:
        # stride-phase space-to-depth; only the (small) strided conv1 input pays this copy
        slab = xp.reshape(n, hq, s, wq, s, cin).transpose(0, 2, 4, 1, 3, 5)
        slab = slab.reshape(n, s * s, hq * wq, cin)
    slab = slab[:, :, :s_rows, :]

    # tap -> (stride phase, row offset inside the dense slab)
    taps = tuple(((dy % s) * s + (dx % s), (dy // s) * wq + (dx // s))
                 for dy in range(3) for dx in range(3))

    # conv weights: (Cout, Cin, 3, 3) -> a single tap-major (9*Cin, Coutp) bf16 tile
    w9 = jnp.transpose(w_oihw, (2, 3, 1, 0)).reshape(9 * cin, cout)
    w9 = jnp.pad(w9, ((0, 0), (0, coutp - cout))).astype(jnp.bfloat16)
    scale_p = jnp.pad(scale, (0, coutp - cout)).reshape(1, coutp).astype(jnp.float32)
    shift_p = jnp.pad(shift, (0, coutp - cout)).reshape(1, coutp).astype(jnp.float32)

    in_specs = [
        pl.BlockSpec((None, s * s, s_rows, cin), lambda b, t: (b, 0, 0, 0)),
        pl.BlockSpec((9 * cin, coutp), lambda b, t: (0, 0)),
        pl.BlockSpec((1, coutp), lambda b, t: (0, 0)),
        pl.BlockSpec((1, coutp), lambda b, t: (0, 0)),
    ]
    args = [slab, w9, scale_p, shift_p]
    flops = 2 * n * padded_md * (9 * cin) * coutp
    bytes_accessed = (slab.size * 2 + w9.size * 2 + (scale_p.size + shift_p.size) * 4
                      + n * padded_md * coutp * jnp.dtype(out_dtype).itemsize)

    if res_mode != "none":
        assert residual.shape[1] == ho and residual.shape[2] == wo, residual.shape
        if res_mode == "add":
            r = residual.astype(jnp.float32)               # keep identity skip in f32
            r = jnp.pad(r, ((0, 0), (0, 0), (0, wq - wo),
                            (0, coutp - residual.shape[-1])))
        else:  # "proj"
            r = residual.astype(jnp.bfloat16)
            r = jnp.pad(r, ((0, 0), (0, 0), (0, wq - wo), (0, 0)))
        r = r.reshape(n, ho * wq, r.shape[-1])
        r = jnp.pad(r, ((0, 0), (0, padded_md - ho * wq), (0, 0)))
        in_specs.append(pl.BlockSpec((None, tm, r.shape[-1]), lambda b, t: (b, t, 0)))
        args.append(r)
        bytes_accessed += r.size * r.dtype.itemsize
        if res_mode == "proj":
            cres = r.shape[-1]
            wres_p = jnp.pad(wres, ((0, 0), (0, coutp - wres.shape[1]))).astype(jnp.bfloat16)
            in_specs.append(pl.BlockSpec((cres, coutp), lambda b, t: (0, 0)))
            args.append(wres_p)
            flops += 2 * n * padded_md * cres * coutp
            bytes_accessed += wres_p.size * 2

    kernel = functools.partial(_conv_bn_kernel, taps, n_tiles, relu, res_mode)
    out = pl.pallas_call(
        kernel,
        out_shape=jax.ShapeDtypeStruct((n, padded_md, coutp), out_dtype),
        grid=(n, n_tiles),
        in_specs=in_specs,
        out_specs=pl.BlockSpec((None, tm, coutp), lambda b, t: (b, t, 0)),
        compiler_params=pltpu.CompilerParams(
            dimension_semantics=("parallel", "parallel"),
            vmem_limit_bytes=_vmem_limit_bytes(),
        ),
        cost_estimate=pl.CostEstimate(
            flops=int(flops), transcendentals=0, bytes_accessed=int(bytes_accessed)),
    )(*args)

    # drop dense-domain padding rows/cols and the padded output channels
    return out[:, :md, :cout].reshape(n, ho, wq, cout)[:, :, :wo, :]


# ------------------------------- block forward ------------------------------ #
def _fold_bn(conv_bias, gamma, beta, mean, var):
    inv_std = 1.0 / jnp.sqrt(var + BN_EPS)
    scale = gamma * inv_std
    shift = (conv_bias - mean) * scale + beta
    return scale, shift


def resnet_block_forward(x_nchw, params, stride):
    cin = x_nchw.shape[1]
    cout = params["w1"].shape[0]
    if cin == cout and stride != 1:
        raise ValueError("Identity residual (cin == cout) requires stride == 1.")

    x = jnp.transpose(x_nchw, (0, 2, 3, 1)).astype(jnp.float32)          # NHWC

    # conv1 (3x3, stride) + BN1 + ReLU -> bf16 intermediate (halves HBM traffic)
    sc1, sh1 = _fold_bn(params["b1"], params["bn1_gamma"], params["bn1_beta"],
                        params["bn1_mean"], params["bn1_var"])
    h1 = fused_conv3x3_bn(x, params["w1"], sc1, sh1, stride=stride, relu=True,
                          out_dtype=jnp.bfloat16)

    # conv2 (3x3, stride 1) + BN2 + residual + final ReLU, all inside one kernel
    sc2, sh2 = _fold_bn(params["b2"], params["bn2_gamma"], params["bn2_beta"],
                        params["bn2_mean"], params["bn2_var"])
    if cin == cout:
        out = fused_conv3x3_bn(h1, params["w2"], sc2, sh2, stride=1, relu=True,
                               res_mode="add", residual=x, out_dtype=jnp.float32)
    else:
        res = x[:, ::stride, ::stride, :]                  # 1x1 strided conv operand
        wres = params["wr"][:, :, 0, 0].T                  # (Cin, Cout)
        out = fused_conv3x3_bn(h1, params["w2"], sc2, sh2 + params["br"], stride=1,
                               relu=True, res_mode="proj", residual=res, wres=wres,
                               out_dtype=jnp.float32)
    return jnp.transpose(out, (0, 3, 1, 2))                # back to NCHW


# --------------------------- deterministic params --------------------------- #
def init_params(key, cin, cout):
    ks = jax.random.split(key, 12)
    p = {
        "w1": 0.1 * jax.random.normal(ks[0], (cout, cin, 3, 3), jnp.float32),
        "b1": 0.05 * jax.random.normal(ks[1], (cout,), jnp.float32),
        "w2": 0.1 * jax.random.normal(ks[2], (cout, cout, 3, 3), jnp.float32),
        "b2": 0.05 * jax.random.normal(ks[3], (cout,), jnp.float32),
        "bn1_gamma": 1.0 + 0.1 * jax.random.normal(ks[4], (cout,), jnp.float32),
        "bn1_beta": 0.1 * jax.random.normal(ks[5], (cout,), jnp.float32),
        "bn1_mean": 0.1 * jax.random.normal(ks[6], (cout,), jnp.float32),
        "bn1_var": jax.random.uniform(ks[7], (cout,), jnp.float32, 0.5, 1.5),
        "bn2_gamma": 1.0 + 0.1 * jax.random.normal(ks[8], (cout,), jnp.float32),
        "bn2_beta": 0.1 * jax.random.normal(ks[9], (cout,), jnp.float32),
        "bn2_mean": 0.1 * jax.random.normal(ks[10], (cout,), jnp.float32),
        "bn2_var": jax.random.uniform(ks[11], (cout,), jnp.float32, 0.5, 1.5),
    }
    if cin != cout:
        kr = jax.random.split(ks[0], 2)
        p["wr"] = 0.1 * jax.random.normal(kr[0], (cout, cin, 1, 1), jnp.float32)
        p["br"] = 0.05 * jax.random.normal(kr[1], (cout,), jnp.float32)
    return p


# ---------------------------- pure-JAX reference ----------------------------- #
def _conv_ref(x, w, b, stride, pad):
    out = jax.lax.conv_general_dilated(
        x, w, window_strides=(stride, stride),
        padding=[(pad, pad), (pad, pad)],
        dimension_numbers=("NCHW", "OIHW", "NCHW"))
    return out + b[None, :, None, None]


def _bn_ref(x, gamma, beta, mean, var):
    inv = 1.0 / jnp.sqrt(var + BN_EPS)
    return (x - mean[None, :, None, None]) * (gamma * inv)[None, :, None, None] \
        + beta[None, :, None, None]


def resnet_block_ref(x, p, stride, cin, cout):
    h = _conv_ref(x, p["w1"], p["b1"], stride, 1)
    h = jax.nn.relu(_bn_ref(h, p["bn1_gamma"], p["bn1_beta"], p["bn1_mean"], p["bn1_var"]))
    h = _conv_ref(h, p["w2"], p["b2"], 1, 1)
    h = _bn_ref(h, p["bn2_gamma"], p["bn2_beta"], p["bn2_mean"], p["bn2_var"])
    y = x if cin == cout else _conv_ref(x, p["wr"], p["br"], stride, 0)
    return jax.nn.relu(h + y)


if __name__ == "__main__":
    key = jax.random.PRNGKey(0)

    # 1) downsample block: cin != cout, stride 2 (exercises the fused 1x1-conv residual)
    N, CIN, H, W, COUT, STRIDE = 2, 4, 16, 16, 8, 2
    kx, kp, key = jax.random.split(key, 3)
    x = jax.random.normal(kx, (N, CIN, H, W), jnp.float32)
    params = init_params(kp, CIN, COUT)
    fwd = jax.jit(functools.partial(resnet_block_forward, stride=STRIDE))
    out = jax.block_until_ready(fwd(x, params))
    ref = jax.block_until_ready(resnet_block_ref(x, params, STRIDE, CIN, COUT))
    assert out.shape == ref.shape == (N, COUT, H // STRIDE, W // STRIDE), out.shape
    err1 = float(jnp.max(jnp.abs(out - ref)))
    assert jnp.allclose(out, ref, rtol=3e-2, atol=3e-2), err1   # bf16 operands, f32 accum

    # 2) identity block: cin == cout, stride 1 (exercises the direct f32 skip add)
    N2, C2, H2, W2 = 2, 8, 8, 8
    kx2, kp2, key = jax.random.split(key, 3)
    x2 = jax.random.normal(kx2, (N2, C2, H2, W2), jnp.float32)
    params2 = init_params(kp2, C2, C2)
    fwd2 = jax.jit(functools.partial(resnet_block_forward, stride=1))
    out2 = jax.block_until_ready(fwd2(x2, params2))
    ref2 = jax.block_until_ready(resnet_block_ref(x2, params2, 1, C2, C2))
    assert out2.shape == ref2.shape == (N2, C2, H2, W2), out2.shape
    err2 = float(jnp.max(jnp.abs(out2 - ref2)))
    assert jnp.allclose(out2, ref2, rtol=3e-2, atol=3e-2), err2

    print("KERNEL_OK")
</pallas_src>

<mosaic_0001>
module attributes {stable_mosaic.version = 11 : i64} {
  func.func @_conv_bn_kernel(%arg0: i32, %arg1: i32, %arg2: memref<1x4x96x4xbf16, #tpu.memory_space<vmem>>, %arg3: memref<36x128xbf16, #tpu.memory_space<vmem>>, %arg4: memref<1x128xf32, #tpu.memory_space<vmem>>, %arg5: memref<1x128xf32, #tpu.memory_space<vmem>>, %arg6: memref<1x80x128xbf16, #tpu.memory_space<vmem>>) attributes {dimension_semantics = [#tpu.dimension_semantics<parallel>, #tpu.dimension_semantics<parallel>], iteration_bounds = array<i64: 2, 1>, scalar_prefetch = 0 : i64, scratch_operands = 0 : i64, tpu.core_type = #tpu.core_type<tc>, window_params = [{transform_indices = @transform_0, window_bounds = array<i64: 1, 4, 96, 4>}, {pipeline_mode = #tpu.pipeline_mode<synchronous>, transform_indices = @transform_1, window_bounds = array<i64: 36, 128>}, {pipeline_mode = #tpu.pipeline_mode<synchronous>, transform_indices = @transform_2, window_bounds = array<i64: 1, 128>}, {pipeline_mode = #tpu.pipeline_mode<synchronous>, transform_indices = @transform_3, window_bounds = array<i64: 1, 128>}, {transform_indices = @transform_4, window_bounds = array<i64: 1, 80, 128>}]} {
    %c0 = arith.constant 0 : index
    %c0_0 = arith.constant 0 : index
    %c0_1 = arith.constant 0 : index
    %c0_2 = arith.constant 0 : index
    %0 = vector.load %arg2[%c0, %c0_0, %c0_1, %c0_2] : memref<1x4x96x4xbf16, #tpu.memory_space<vmem>>, vector<1x1x80x4xbf16>
    %1 = vector.shape_cast %0 : vector<1x1x80x4xbf16> to vector<80x4xbf16>
    %2 = arith.extf %1 : vector<80x4xbf16> to vector<80x4xf32>
    %c0_3 = arith.constant 0 : index
    %c1 = arith.constant 1 : index
    %c0_4 = arith.constant 0 : index
    %c0_5 = arith.constant 0 : index
    %3 = vector.load %arg2[%c0_3, %c1, %c0_4, %c0_5] : memref<1x4x96x4xbf16, #tpu.memory_space<vmem>>, vector<1x1x80x4xbf16>
    %4 = vector.shape_cast %3 : vector<1x1x80x4xbf16> to vector<80x4xbf16>
    %5 = arith.extf %4 : vector<80x4xbf16> to vector<80x4xf32>
    %c0_6 = arith.constant 0 : index
    %c0_7 = arith.constant 0 : index
    %c1_8 = arith.constant 1 : index
    %c0_9 = arith.constant 0 : index
    %6 = vector.load %arg2[%c0_6, %c0_7, %c1_8, %c0_9] : memref<1x4x96x4xbf16, #tpu.memory_space<vmem>>, vector<1x1x80x4xbf16>
    %7 = vector.shape_cast %6 : vector<1x1x80x4xbf16> to vector<80x4xbf16>
    %8 = arith.extf %7 : vector<80x4xbf16> to vector<80x4xf32>
    %c0_10 = arith.constant 0 : index
    %c2 = arith.constant 2 : index
    %c0_11 = arith.constant 0 : index
    %c0_12 = arith.constant 0 : index
    %9 = vector.load %arg2[%c0_10, %c2, %c0_11, %c0_12] : memref<1x4x96x4xbf16, #tpu.memory_space<vmem>>, vector<1x1x80x4xbf16>
    %10 = vector.shape_cast %9 : vector<1x1x80x4xbf16> to vector<80x4xbf16>
    %11 = arith.extf %10 : vector<80x4xbf16> to vector<80x4xf32>
    %c0_13 = arith.constant 0 : index
    %c3 = arith.constant 3 : index
    %c0_14 = arith.constant 0 : index
    %c0_15 = arith.constant 0 : index
    %12 = vector.load %arg2[%c0_13, %c3, %c0_14, %c0_15] : memref<1x4x96x4xbf16, #tpu.memory_space<vmem>>, vector<1x1x80x4xbf16>
    %13 = vector.shape_cast %12 : vector<1x1x80x4xbf16> to vector<80x4xbf16>
    %14 = arith.extf %13 : vector<80x4xbf16> to vector<80x4xf32>
    %c0_16 = arith.constant 0 : index
    %c2_17 = arith.constant 2 : index
    %c1_18 = arith.constant 1 : index
    %c0_19 = arith.constant 0 : index
    %15 = vector.load %arg2[%c0_16, %c2_17, %c1_18, %c0_19] : memref<1x4x96x4xbf16, #tpu.memory_space<vmem>>, vector<1x1x80x4xbf16>
    %16 = vector.shape_cast %15 : vector<1x1x80x4xbf16> to vector<80x4xbf16>
    %17 = arith.extf %16 : vector<80x4xbf16> to vector<80x4xf32>
    %c0_20 = arith.constant 0 : index
    %c0_21 = arith.constant 0 : index
    %c9 = arith.constant 9 : index
    %c0_22 = arith.constant 0 : index
    %18 = vector.load %arg2[%c0_20, %c0_21, %c9, %c0_22] : memref<1x4x96x4xbf16, #tpu.memory_space<vmem>>, vector<1x1x80x4xbf16>
    %19 = vector.shape_cast %18 : vector<1x1x80x4xbf16> to vector<80x4xbf16>
    %20 = arith.extf %19 : vector<80x4xbf16> to vector<80x4xf32>
    %c0_23 = arith.constant 0 : index
    %c1_24 = arith.constant 1 : index
    %c9_25 = arith.constant 9 : index
    %c0_26 = arith.constant 0 : index
    %21 = vector.load %arg2[%c0_23, %c1_24, %c9_25, %c0_26] : memref<1x4x96x4xbf16, #tpu.memory_space<vmem>>, vector<1x1x80x4xbf16>
    %22 = vector.shape_cast %21 : vector<1x1x80x4xbf16> to vector<80x4xbf16>
    %23 = arith.extf %22 : vector<80x4xbf16> to vector<80x4xf32>
    %c0_27 = arith.constant 0 : index
    %c0_28 = arith.constant 0 : index
    %c10 = arith.constant 10 : index
    %c0_29 = arith.constant 0 : index
    %24 = vector.load %arg2[%c0_27, %c0_28, %c10, %c0_29] : memref<1x4x96x4xbf16, #tpu.memory_space<vmem>>, vector<1x1x80x4xbf16>
    %25 = vector.shape_cast %24 : vector<1x1x80x4xbf16> to vector<80x4xbf16>
    %26 = arith.extf %25 : vector<80x4xbf16> to vector<80x4xf32>
    %27 = tpu.concatenate %2, %5, %8, %11, %14, %17, %20, %23, %26 in 1 : vector<80x4xf32>, vector<80x4xf32>, vector<80x4xf32>, vector<80x4xf32>, vector<80x4xf32>, vector<80x4xf32>, vector<80x4xf32>, vector<80x4xf32>, vector<80x4xf32> -> vector<80x36xf32>
    %28 = arith.truncf %27 : vector<80x36xf32> to vector<80x36xbf16>
    %c0_30 = arith.constant 0 : index
    %c0_31 = arith.constant 0 : index
    %29 = vector.load %arg3[%c0_30, %c0_31] : memref<36x128xbf16, #tpu.memory_space<vmem>>, vector<36x128xbf16>
    %cst = arith.constant dense<0.000000e+00> : vector<80x128xf32>
    %30 = tpu.matmul %28, %29, %cst {dimension_numbers = #tpu.dot_dimension_numbers<[1], [0], [0], [1], [0, 0, 1, 1], [], []>} : vector<80x36xbf16>, vector<36x128xbf16>, vector<80x128xf32> -> vector<80x128xf32>
    %c0_32 = arith.constant 0 : index
    %c0_33 = arith.constant 0 : index
    %31 = vector.load %arg4[%c0_32, %c0_33] : memref<1x128xf32, #tpu.memory_space<vmem>>, vector<1x128xf32>
    %32 = vector.broadcast %31 : vector<1x128xf32> to vector<80x128xf32>
    %33 = arith.mulf %30, %32 : vector<80x128xf32>
    %c0_34 = arith.constant 0 : index
    %c0_35 = arith.constant 0 : index
    %34 = vector.load %arg5[%c0_34, %c0_35] : memref<1x128xf32, #tpu.memory_space<vmem>>, vector<1x128xf32>
    %35 = vector.broadcast %34 : vector<1x128xf32> to vector<80x128xf32>
    %36 = arith.addf %33, %35 : vector<80x128xf32>
    %cst_36 = arith.constant 0.000000e+00 : f32
    %37 = vector.broadcast %cst_36 : f32 to vector<80x128xf32>
    %38 = arith.maximumf %36, %37 : vector<80x128xf32>
    %39 = arith.truncf %38 : vector<80x128xf32> to vector<80x128xbf16>
    %c0_37 = arith.constant 0 : index
    %c0_38 = arith.constant 0 : index
    %c0_39 = arith.constant 0 : index
    %40 = vector.load %arg6[%c0_37, %c0_38, %c0_39] : memref<1x80x128xbf16, #tpu.memory_space<vmem>>, vector<1x80x128xbf16>
    %41 = vector.shape_cast %40 : vector<1x80x128xbf16> to vector<80x128xbf16>
    %42 = vector.shape_cast %39 : vector<80x128xbf16> to vector<1x80x128xbf16>
    tpu.vector_store %arg6[%c0_37, %c0_38, %c0_39], %42 {strides = array<i32>} : memref<1x80x128xbf16, #tpu.memory_space<vmem>>, vector<1x80x128xbf16>,
    return
  }
  func.func @transform_0(%arg0: i32, %arg1: i32) -> (i32, i32, i32, i32) {
    %c0_i32 = arith.constant 0 : i32
    %c0_i32_0 = arith.constant 0 : i32
    %c0_i32_1 = arith.constant 0 : i32
    %c0_i32_2 = arith.constant 0 : i32
    return %arg0, %c0_i32, %c0_i32_0, %c0_i32_1 : i32, i32, i32, i32
  }
  func.func @transform_1(%arg0: i32, %arg1: i32) -> (i32, i32) {
    %c0_i32 = arith.constant 0 : i32
    %c0_i32_0 = arith.constant 0 : i32
    %c0_i32_1 = arith.constant 0 : i32
    return %c0_i32, %c0_i32_0 : i32, i32
  }
  func.func @transform_2(%arg0: i32, %arg1: i32) -> (i32, i32) {
    %c0_i32 = arith.constant 0 : i32
    %c0_i32_0 = arith.constant 0 : i32
    %c0_i32_1 = arith.constant 0 : i32
    return %c0_i32, %c0_i32_0 : i32, i32
  }
  func.func @transform_3(%arg0: i32, %arg1: i32) -> (i32, i32) {
    %c0_i32 = arith.constant 0 : i32
    %c0_i32_0 = arith.constant 0 : i32
    %c0_i32_1 = arith.constant 0 : i32
    return %c0_i32, %c0_i32_0 : i32, i32
  }
  func.func @transform_4(%arg0: i32, %arg1: i32) -> (i32, i32, i32) {
    %c0_i32 = arith.constant 0 : i32
    %c0_i32_0 = arith.constant 0 : i32
    return %arg0, %arg1, %c0_i32 : i32, i32, i32
  }
}

module attributes {stable_mosaic.version = 11 : i64} {
  func.func @_conv_bn_kernel(%arg0: i32, %arg1: i32, %arg2: memref<1x1x104x8xbf16, #tpu.memory_space<vmem>>, %arg3: memref<72x128xbf16, #tpu.memory_space<vmem>>, %arg4: memref<1x128xf32, #tpu.memory_space<vmem>>, %arg5: memref<1x128xf32, #tpu.memory_space<vmem>>, %arg6: memref<1x80x4xbf16, #tpu.memory_space<vmem>>, %arg7: memref<4x128xbf16, #tpu.memory_space<vmem>>, %arg8: memref<1x80x128xf32, #tpu.memory_space<vmem>>) attributes {dimension_semantics = [#tpu.dimension_semantics<parallel>, #tpu.dimension_semantics<parallel>], iteration_bounds = array<i64: 2, 1>, scalar_prefetch = 0 : i64, scratch_operands = 0 : i64, tpu.core_type = #tpu.core_type<tc>, window_params = [{transform_indices = @transform_0, window_bounds = array<i64: 1, 1, 104, 8>}, {pipeline_mode = #tpu.pipeline_mode<synchronous>, transform_indices = @transform_1, window_bounds = array<i64: 72, 128>}, {pipeline_mode = #tpu.pipeline_mode<synchronous>, transform_indices = @transform_2, window_bounds = array<i64: 1, 128>}, {pipeline_mode = #tpu.pipeline_mode<synchronous>, transform_indices = @transform_3, window_bounds = array<i64: 1, 128>}, {transform_indices = @transform_4, window_bounds = array<i64: 1, 80, 4>}, {pipeline_mode = #tpu.pipeline_mode<synchronous>, transform_indices = @transform_5, window_bounds = array<i64: 4, 128>}, {transform_indices = @transform_6, window_bounds = array<i64: 1, 80, 128>}]} {
    %c0 = arith.constant 0 : index
    %c0_0 = arith.constant 0 : index
    %c0_1 = arith.constant 0 : index
    %c0_2 = arith.constant 0 : index
    %0 = vector.load %arg2[%c0, %c0_0, %c0_1, %c0_2] : memref<1x1x104x8xbf16, #tpu.memory_space<vmem>>, vector<1x1x80x8xbf16>
    %1 = vector.shape_cast %0 : vector<1x1x80x8xbf16> to vector<80x8xbf16>
    %2 = arith.extf %1 : vector<80x8xbf16> to vector<80x8xf32>
    %c0_3 = arith.constant 0 : index
    %c0_4 = arith.constant 0 : index
    %c1 = arith.constant 1 : index
    %c0_5 = arith.constant 0 : index
    %3 = vector.load %arg2[%c0_3, %c0_4, %c1, %c0_5] : memref<1x1x104x8xbf16, #tpu.memory_space<vmem>>, vector<1x1x80x8xbf16>
    %4 = vector.shape_cast %3 : vector<1x1x80x8xbf16> to vector<80x8xbf16>
    %5 = arith.extf %4 : vector<80x8xbf16> to vector<80x8xf32>
    %c0_6 = arith.constant 0 : index
    %c0_7 = arith.constant 0 : index
    %c2 = arith.constant 2 : index
    %c0_8 = arith.constant 0 : index
    %6 = vector.load %arg2[%c0_6, %c0_7, %c2, %c0_8] : memref<1x1x104x8xbf16, #tpu.memory_space<vmem>>, vector<1x1x80x8xbf16>
    %7 = vector.shape_cast %6 : vector<1x1x80x8xbf16> to vector<80x8xbf16>
    %8 = arith.extf %7 : vector<80x8xbf16> to vector<80x8xf32>
    %c0_9 = arith.constant 0 : index
    %c0_10 = arith.constant 0 : index
    %c10 = arith.constant 10 : index
    %c0_11 = arith.constant 0 : index
    %9 = vector.load %arg2[%c0_9, %c0_10, %c10, %c0_11] : memref<1x1x104x8xbf16, #tpu.memory_space<vmem>>, vector<1x1x80x8xbf16>
    %10 = vector.shape_cast %9 : vector<1x1x80x8xbf16> to vector<80x8xbf16>
    %11 = arith.extf %10 : vector<80x8xbf16> to vector<80x8xf32>
    %c0_12 = arith.constant 0 : index
    %c0_13 = arith.constant 0 : index
    %c11 = arith.constant 11 : index
    %c0_14 = arith.constant 0 : index
    %12 = vector.load %arg2[%c0_12, %c0_13, %c11, %c0_14] : memref<1x1x104x8xbf16, #tpu.memory_space<vmem>>, vector<1x1x80x8xbf16>
    %13 = vector.shape_cast %12 : vector<1x1x80x8xbf16> to vector<80x8xbf16>
    %14 = arith.extf %13 : vector<80x8xbf16> to vector<80x8xf32>
    %c0_15 = arith.constant 0 : index
    %c0_16 = arith.constant 0 : index
    %c12 = arith.constant 12 : index
    %c0_17 = arith.constant 0 : index
    %15 = vector.load %arg2[%c0_15, %c0_16, %c12, %c0_17] : memref<1x1x104x8xbf16, #tpu.memory_space<vmem>>, vector<1x1x80x8xbf16>
    %16 = vector.shape_cast %15 : vector<1x1x80x8xbf16> to vector<80x8xbf16>
    %17 = arith.extf %16 : vector<80x8xbf16> to vector<80x8xf32>
    %c0_18 = arith.constant 0 : index
    %c0_19 = arith.constant 0 : index
    %c20 = arith.constant 20 : index
    %c0_20 = arith.constant 0 : index
    %18 = vector.load %arg2[%c0_18, %c0_19, %c20, %c0_20] : memref<1x1x104x8xbf16, #tpu.memory_space<vmem>>, vector<1x1x80x8xbf16>
    %19 = vector.shape_cast %18 : vector<1x1x80x8xbf16> to vector<80x8xbf16>
    %20 = arith.extf %19 : vector<80x8xbf16> to vector<80x8xf32>
    %c0_21 = arith.constant 0 : index
    %c0_22 = arith.constant 0 : index
    %c21 = arith.constant 21 : index
    %c0_23 = arith.constant 0 : index
    %21 = vector.load %arg2[%c0_21, %c0_22, %c21, %c0_23] : memref<1x1x104x8xbf16, #tpu.memory_space<vmem>>, vector<1x1x80x8xbf16>
    %22 = vector.shape_cast %21 : vector<1x1x80x8xbf16> to vector<80x8xbf16>
    %23 = arith.extf %22 : vector<80x8xbf16> to vector<80x8xf32>
    %c0_24 = arith.constant 0 : index
    %c0_25 = arith.constant 0 : index
    %c22 = arith.constant 22 : index
    %c0_26 = arith.constant 0 : index
    %24 = vector.load %arg2[%c0_24, %c0_25, %c22, %c0_26] : memref<1x1x104x8xbf16, #tpu.memory_space<vmem>>, vector<1x1x80x8xbf16>
    %25 = vector.shape_cast %24 : vector<1x1x80x8xbf16> to vector<80x8xbf16>
    %26 = arith.extf %25 : vector<80x8xbf16> to vector<80x8xf32>
    %27 = tpu.concatenate %2, %5, %8, %11, %14, %17, %20, %23, %26 in 1 : vector<80x8xf32>, vector<80x8xf32>, vector<80x8xf32>, vector<80x8xf32>, vector<80x8xf32>, vector<80x8xf32>, vector<80x8xf32>, vector<80x8xf32>, vector<80x8xf32> -> vector<80x72xf32>
    %28 = arith.truncf %27 : vector<80x72xf32> to vector<80x72xbf16>
    %c0_27 = arith.constant 0 : index
    %c0_28 = arith.constant 0 : index
    %29 = vector.load %arg3[%c0_27, %c0_28] : memref<72x128xbf16, #tpu.memory_space<vmem>>, vector<72x128xbf16>
    %cst = arith.constant dense<0.000000e+00> : vector<80x128xf32>
    %30 = tpu.matmul %28, %29, %cst {dimension_numbers = #tpu.dot_dimension_numbers<[1], [0], [0], [1], [0, 0, 1, 1], [], []>} : vector<80x72xbf16>, vector<72x128xbf16>, vector<80x128xf32> -> vector<80x128xf32>
    %c0_29 = arith.constant 0 : index
    %c0_30 = arith.constant 0 : index
    %31 = vector.load %arg4[%c0_29, %c0_30] : memref<1x128xf32, #tpu.memory_space<vmem>>, vector<1x128xf32>
    %32 = vector.broadcast %31 : vector<1x128xf32> to vector<80x128xf32>
    %33 = arith.mulf %30, %32 : vector<80x128xf32>
    %c0_31 = arith.constant 0 : index
    %c0_32 = arith.constant 0 : index
    %34 = vector.load %arg5[%c0_31, %c0_32] : memref<1x128xf32, #tpu.memory_space<vmem>>, vector<1x128xf32>
    %35 = vector.broadcast %34 : vector<1x128xf32> to vector<80x128xf32>
    %36 = arith.addf %33, %35 : vector<80x128xf32>
    %c0_33 = arith.constant 0 : index
    %c0_34 = arith.constant 0 : index
    %c0_35 = arith.constant 0 : index
    %37 = vector.load %arg6[%c0_33, %c0_34, %c0_35] : memref<1x80x4xbf16, #tpu.memory_space<vmem>>, vector<1x80x4xbf16>
    %38 = vector.shape_cast %37 : vector<1x80x4xbf16> to vector<80x4xbf16>
    %c0_36 = arith.constant 0 : index
    %c0_37 = arith.constant 0 : index
    %39 = vector.load %arg7[%c0_36, %c0_37] : memref<4x128xbf16, #tpu.memory_space<vmem>>, vector<4x128xbf16>
    %cst_38 = arith.constant dense<0.000000e+00> : vector<80x128xf32>
    %40 = tpu.matmul %38, %39, %cst_38 {dimension_numbers = #tpu.dot_dimension_numbers<[1], [0], [0], [1], [0, 0, 1, 1], [], []>} : vector<80x4xbf16>, vector<4x128xbf16>, vector<80x128xf32> -> vector<80x128xf32>
    %41 = arith.addf %36, %40 : vector<80x128xf32>
    %cst_39 = arith.constant 0.000000e+00 : f32
    %42 = vector.broadcast %cst_39 : f32 to vector<80x128xf32>
    %43 = arith.maximumf %41, %42 : vector<80x128xf32>
    %c0_40 = arith.constant 0 : index
    %c0_41 = arith.constant 0 : index
    %c0_42 = arith.constant 0 : index
    %44 = vector.load %arg8[%c0_40, %c0_41, %c0_42] : memref<1x80x128xf32, #tpu.memory_space<vmem>>, vector<1x80x128xf32>
    %45 = vector.shape_cast %44 : vector<1x80x128xf32> to vector<80x128xf32>
    %46 = vector.shape_cast %43 : vector<80x128xf32> to vector<1x80x128xf32>
    tpu.vector_store %arg8[%c0_40, %c0_41, %c0_42], %46 {strides = array<i32>} : memref<1x80x128xf32, #tpu.memory_space<vmem>>, vector<1x80x128xf32>,
    return
  }
  func.func @transform_0(%arg0: i32, %arg1: i32) -> (i32, i32, i32, i32) {
    %c0_i32 = arith.constant 0 : i32
    %c0_i32_0 = arith.constant 0 : i32
    %c0_i32_1 = arith.constant 0 : i32
    %c0_i32_2 = arith.constant 0 : i32
    return %arg0, %c0_i32, %c0_i32_0, %c0_i32_1 : i32, i32, i32, i32
  }
  func.func @transform_1(%arg0: i32, %arg1: i32) -> (i32, i32) {
    %c0_i32 = arith.constant 0 : i32
    %c0_i32_0 = arith.constant 0 : i32
    %c0_i32_1 = arith.constant 0 : i32
    return %c0_i32, %c0_i32_0 : i32, i32
  }
  func.func @transform_2(%arg0: i32, %arg1: i32) -> (i32, i32) {
    %c0_i32 = arith.constant 0 : i32
    %c0_i32_0 = arith.constant 0 : i32
    %c0_i32_1 = arith.constant 0 : i32
    return %c0_i32, %c0_i32_0 : i32, i32
  }
  func.func @transform_3(%arg0: i32, %arg1: i32) -> (i32, i32) {
    %c0_i32 = arith.constant 0 : i32
    %c0_i32_0 = arith.constant 0 : i32
    %c0_i32_1 = arith.constant 0 : i32
    return %c0_i32, %c0_i32_0 : i32, i32
  }
  func.func @transform_4(%arg0: i32, %arg1: i32) -> (i32, i32, i32) {
    %c0_i32 = arith.constant 0 : i32
    %c0_i32_0 = arith.constant 0 : i32
    return %arg0, %arg1, %c0_i32 : i32, i32, i32
  }
  func.func @transform_5(%arg0: i32, %arg1: i32) -> (i32, i32) {
    %c0_i32 = arith.constant 0 : i32
    %c0_i32_0 = arith.constant 0 : i32
    %c0_i32_1 = arith.constant 0 : i32
    return %c0_i32, %c0_i32_0 : i32, i32
  }
  func.func @transform_6(%arg0: i32, %arg1: i32) -> (i32, i32, i32) {
    %c0_i32 = arith.constant 0 : i32
    %c0_i32_0 = arith.constant 0 : i32
    return %arg0, %arg1, %c0_i32 : i32, i32, i32
  }
}

</mosaic_0001>

<llo_original>
// kernel: resnet_block_forward.2
$region0: #{resnet_block_forward.2}
  #allocation0 [shape = 'u32[]', space=smem, size = 0x4, offset = 0x4, fixed_abs, tag = 'smem constant byte address 0x4 - core index']
  #allocation1 [shape = 'u32[144,128]{1,0:T(1,128)}', space=vmem, size = 0x12000, scoped, tag = 'internal scratch']
  %s0 = inlined_call_operand.vmem [shape: bf16[2,4,96,4], index: 0, kind: input, shape index: {}]
  %s1 = inlined_call_operand.vmem [shape: bf16[36,128], index: 1, kind: input, shape index: {}]
  %s2 = inlined_call_operand.vmem [shape: f32[1,128], index: 2, kind: input, shape index: {}]
  %s3 = inlined_call_operand.vmem [shape: f32[1,128], index: 3, kind: input, shape index: {}]
  %s4 = inlined_call_operand.vmem [shape: bf16[2,80,128], index: 4, kind: output, shape index: {}]
  %s5 = sld [smem:[#allocation0]]
  $region49: #{resnet_block_forward.2} parent=0
    _
  %s7 = ssub.s32 1, %s5
  %s8 = scalar_select 0, %s7, %s5
  loop: start=0, step=1, limit=4
  $region2: #{resnet_block_forward.2} parent=0 // loop_pre_header
    _
  $region3: #{resnet_block_forward.2} parent=0 // loop_header
    %s10 = sphi 0, %s14
    %p11 = scmp.ge.s32.totalorder %s10, 4
    %s17 = sphi 0, %s29
    %s18 = sphi 0, %s25
    %s19 = sphi 0, %s17
    %s20 = sphi 0, %s18
    %s21 = sphi 0, %s19
    %s22 = sphi 0, %s20
    %s32 = sphi 0, %s34
    %s35 = sphi 0, %s32
    %s36 = sphi 0, %s35
    %s52 = sphi 0, %s36
    %s56 = sphi 0, %s56
    %s58 = sphi 0, %s56
    %s59 = sphi 0, %s58
    %s73 = sphi 0, %s59
    %s77 = sphi 0, %s77
    %s79 = sphi 0, %s77
    %s80 = sphi 0, %s79
    %s94 = sphi 0, %s80
    %s98 = sphi 0, %s98
    %s100 = sphi 0, %s98
    %s101 = sphi 0, %s100
    %s115 = sphi 0, %s101
    %s123 = sphi 0, %s125
    %s126 = sphi 0, %s123
    %s127 = sphi 0, %s126
    %s143 = sphi 0, %s127
  $region4: #{resnet_block_forward.2} parent=0 // loop_header_branch
    %13 = sbr.rel (%p11) target = $region8
  $region5: #{resnet_block_forward.2} parent=0 // loop_body
    %s15 = ssub.s32 %s10, 1
    %s16 = ssub.s32 %s10, 2
    %s23 = sadd.s32 1, %s18
    %p24 = scmp.ge.s32.totalorder %s23, 1
    %s25 = scalar_select %p24, 0, %s23
    %s26 = sadd.s32 1, %s17
    %s27 = scalar_select %p24, %s26, %s17
    %p28 = scmp.ge.s32.totalorder %s27, 2
    %s29 = scalar_select %p28, 0, %s27
    %s30 = ssub.s32 %s17, %s29
    %p31 = scmp.eq.s32.totalorder %s30, 0
    %s33 = sadd.s32 %s32, 1
    %s34 = scalar_select %p31, %s32, %s33
    %p37 = pneg %p31
    %p38 = scmp.eq.s32.totalorder %s10, 1
    %p39 = por %p37, %p38
    %p40 = scmp.ne.s32.totalorder %s32, %s35
    %p41 = scmp.eq.s32.totalorder %s10, 0
    %p42 = por %p40, %p41
    %p43 = scmp.ne.s32.totalorder %s32, %s35
    %p44 = scmp.eq.s32.totalorder %s15, 1
    %p45 = por %p43, %p44
    %p46 = scmp.ne.s32.totalorder %s35, %s36
    %p47 = scmp.eq.s32.totalorder %s15, 0
    %p48 = por %p46, %p47
    %p49 = scmp.ne.s32.totalorder %s35, %s36
    %p50 = scmp.eq.s32.totalorder %s16, 1
    %p51 = por %p49, %p50
    %p53 = scmp.ne.s32.totalorder %s36, %s52
    %p54 = scmp.eq.s32.totalorder %s16, 0
    %p55 = por %p53, %p54
    %s57 = sadd.s32 %s56, 1
    %p60 = scmp.eq.s32.totalorder %s10, 1
    %p61 = scmp.ne.s32.totalorder %s56, %s58
    %p62 = scmp.eq.s32.totalorder %s10, 0
    %p63 = por %p61, %p62
    %p64 = scmp.ne.s32.totalorder %s56, %s58
    %p65 = scmp.eq.s32.totalorder %s15, 1
    %p66 = por %p64, %p65
    %p67 = scmp.ne.s32.totalorder %s58, %s59
    %p68 = scmp.eq.s32.totalorder %s15, 0
    %p69 = por %p67, %p68
    %p70 = scmp.ne.s32.totalorder %s58, %s59
    %p71 = scmp.eq.s32.totalorder %s16, 1
    %p72 = por %p70, %p71
    %p74 = scmp.ne.s32.totalorder %s59, %s73
    %p75 = scmp.eq.s32.totalorder %s16, 0
    %p76 = por %p74, %p75
    %s78 = sadd.s32 %s77, 1
    %p81 = scmp.eq.s32.totalorder %s10, 1
    %p82 = scmp.ne.s32.totalorder %s77, %s79
    %p83 = scmp.eq.s32.totalorder %s10, 0
    %p84 = por %p82, %p83
    %p85 = scmp.ne.s32.totalorder %s77, %s79
    %p86 = scmp.eq.s32.totalorder %s15, 1
    %p87 = por %p85, %p86
    %p88 = scmp.ne.s32.totalorder %s79, %s80
    %p89 = scmp.eq.s32.totalorder %s15, 0
    %p90 = por %p88, %p89
    %p91 = scmp.ne.s32.totalorder %s79, %s80
    %p92 = scmp.eq.s32.totalorder %s16, 1
    %p93 = por %p91, %p92
    %p95 = scmp.ne.s32.totalorder %s80, %s94
    %p96 = scmp.eq.s32.totalorder %s16, 0
    %p97 = por %p95, %p96
    %s99 = sadd.s32 %s98, 1
    %p102 = scmp.eq.s32.totalorder %s10, 1
    %p103 = scmp.ne.s32.totalorder %s98, %s100
    %p104 = scmp.eq.s32.totalorder %s10, 0
    %p105 = por %p103, %p104
    %p106 = scmp.ne.s32.totalorder %s98, %s100
    %p107 = scmp.eq.s32.totalorder %s15, 1
    %p108 = por %p106, %p107
    %p109 = scmp.ne.s32.totalorder %s100, %s101
    %p110 = scmp.eq.s32.totalorder %s15, 0
    %p111 = por %p109, %p110
    %p112 = scmp.ne.s32.totalorder %s100, %s101
    %p113 = scmp.eq.s32.totalorder %s16, 1
    %p114 = por %p112, %p113
    %p116 = scmp.ne.s32.totalorder %s101, %s115
    %p117 = scmp.eq.s32.totalorder %s16, 0
    %p118 = por %p116, %p117
    %s119 = ssub.s32 %s17, %s29
    %s120 = ssub.s32 %s18, %s25
    %s121 = sor.u32 %s119, %s120
    %p122 = scmp.eq.s32.totalorder %s121, 0
    %s124 = sadd.s32 %s123, 1
    %s125 = scalar_select %p122, %s123, %s124
    %p128 = pneg %p122
    %p129 = scmp.eq.s32.totalorder %s10, 1
    %p130 = por %p128, %p129
    %p131 = scmp.ne.s32.totalorder %s123, %s126
    %p132 = scmp.eq.s32.totalorder %s10, 0
    %p133 = por %p131, %p132
    %p134 = scmp.ne.s32.totalorder %s123, %s126
    %p135 = scmp.eq.s32.totalorder %s15, 1
    %p136 = por %p134, %p135
    %p137 = scmp.ne.s32.totalorder %s126, %s127
    %p138 = scmp.eq.s32.totalorder %s15, 0
    %p139 = por %p137, %p138
    %p140 = scmp.ne.s32.totalorder %s126, %s127
    %p141 = scmp.eq.s32.totalorder %s16, 1
    %p142 = por %p140, %p141
    %p144 = scmp.ne.s32.totalorder %s127, %s143
    %p145 = scmp.eq.s32.totalorder %s16, 0
    %p146 = por %p144, %p145
    %p147 = scmp.le.s32.totalorder 1, %s10
    %p148 = scmp.lt.s32.totalorder %s10, 3
    %p149 = pnand %p147, %p148
    %p150 = pneg %p149
    // Predicated region
    $region9: #{resnet_block_forward.2} parent=5 // pred_check
      _
    $region10: #{resnet_block_forward.2} parent=5 // pred_check_branch
      %152 = sbr.rel (%p149) target = $region12
    $region11: #{resnet_block_forward.2} parent=5 // pred_region
      %s153 = ssub.s32 %s10, 1
      // Predicated region
      $region13: #{resnet_block_forward.2} parent=11 // pred_check
        %p154 = pneg %p69
      $region14: #{resnet_block_forward.2} parent=11 // pred_check_branch
        %156 = sbr.rel (%p154) target = $region16
      $region15: #{resnet_block_forward.2} parent=11 // pred_region
        _
      $region16: #{resnet_block_forward.2} parent=11 // pred_fallthru
        _
      // Predicated region
      $region17: #{resnet_block_forward.2} parent=11 // pred_check
        %p157 = pneg %p90
      $region18: #{resnet_block_forward.2} parent=11 // pred_check_branch
        %159 = sbr.rel (%p157) target = $region20
      $region19: #{resnet_block_forward.2} parent=11 // pred_region
        _
      $region20: #{resnet_block_forward.2} parent=11 // pred_fallthru
        _
      // Predicated region
      $region21: #{resnet_block_forward.2} parent=11 // pred_check
        %p160 = pneg %p111
      $region22: #{resnet_block_forward.2} parent=11 // pred_check_branch
        %162 = sbr.rel (%p160) target = $region24
      $region23: #{resnet_block_forward.2} parent=11 // pred_region
        _
      $region24: #{resnet_block_forward.2} parent=11 // pred_fallthru
        _
    $region12: #{resnet_block_forward.2} parent=5 // pred_fallthru
      _
    %p163 = scmp.lt.s32.totalorder %s10, 2
    // Predicated region
    $region25: #{resnet_block_forward.2} parent=5 // pred_check
      %p164 = pneg %p163
    $region26: #{resnet_block_forward.2} parent=5 // pred_check_branch
      %166 = sbr.rel (%p164) target = $region28
    $region27: #{resnet_block_forward.2} parent=5 // pred_region
      // Predicated region
      $region29: #{resnet_block_forward.2} parent=27 // pred_check
        %p167 = pneg %p42
      $region30: #{resnet_block_forward.2} parent=27 // pred_check_branch
        %169 = sbr.rel (%p167) target = $region32
      $region31: #{resnet_block_forward.2} parent=27 // pred_region
        %p170 = scmp.lt.s32.totalorder %s17, 1
        %s171 = scalar_select %p170, %s17, 1
        %s172 = smul.addr %s171, 48
        %s173 = smul.addr %s172, 4
        %s174 = scalar_lea.vmem %s0, %s173
      $region32: #{resnet_block_forward.2} parent=27 // pred_fallthru
        _
    $region28: #{resnet_block_forward.2} parent=5 // pred_fallthru
      _
    %p175 = scmp.le.s32.totalorder 1, %s10
    %p176 = scmp.lt.s32.totalorder %s10, 3
    %p177 = pnand %p175, %p176
    %p178 = pneg %p177
    // Predicated region
    $region33: #{resnet_block_forward.2} parent=5 // pred_check
      _
    $region34: #{resnet_block_forward.2} parent=5 // pred_check_branch
      %180 = sbr.rel (%p177) target = $region36
    $region35: #{resnet_block_forward.2} parent=5 // pred_region
      %s181 = ssub.s32 %s10, 1
      %p182 = scmp.lt.s32.totalorder %s19, 1
      %s183 = scalar_select %p182, %s19, 1
      %s184 = smul.addr %s183, 48
      %s185 = smul.addr %s184, 4
      %s186 = scalar_lea.vmem %s0, %s185
      %p187 = pneg %p48
      %p188 = pneg %p45
      %p189 = pneg %p69
      %p190 = pneg %p66
      %p191 = pneg %p90
      %p192 = pneg %p87
      %p193 = pneg %p111
      %p194 = pneg %p108
      %p195 = pneg %p139
      %p196 = pneg %p136
      %s197 = smul.u32 10, %s20
      %p198 = scmp.lt.s32.totalorder %s19, 1
      %s199 = scalar_select %p198, %s19, 1
      %p200 = scmp.lt.s32.totalorder %s197, 9
      %s201 = scalar_select %p200, %s197, 9
      %s202 = smul.addr %s199, 10
      %s203 = sadd.s32 %s201, %s202
      %s204 = smul.addr %s203, 4
      %s205 = scalar_lea.vmem %s4, %s204
      %p206 = scmp.lt.s32.totalorder %s19, 1
      %s207 = scalar_select %p206, %s19, 1
      %s208 = smul.addr %s207, 48
      %s209 = smul.addr %s208, 4
      %s210 = scalar_lea.vmem %s0, %s209
      %s211 = smul.u32 10, %s20
      %p212 = scmp.lt.s32.totalorder %s19, 1
      %s213 = scalar_select %p212, %s19, 1
      %p214 = scmp.lt.s32.totalorder %s211, 9
      %s215 = scalar_select %p214, %s211, 9
      %s216 = smul.addr %s213, 10
      %s217 = sadd.s32 %s215, %s216
      %s218 = smul.addr %s217, 4
      %s219 = scalar_lea.vmem %s4, %s218
      %s220 = smul.u32 10, %s20
      %v222 = vld [vmem:[%s210] sm:$0xf]
      %v223 = vld [vmem:[%s210 + $0x4] sm:$0xf]
      %v224 = vld [vmem:[%s210 + $0x8] sm:$0xf]
      %v225 = vld [vmem:[%s210 + $0xc] sm:$0xf]
      %v226 = vld [vmem:[%s210 + $0x10] sm:$0xf]
      %v227 = vld [vmem:[%s210 + $0x14] sm:$0xf]
      %v228 = vld [vmem:[%s210 + $0x18] sm:$0xf]
      %v229 = vld [vmem:[%s210 + $0x1c] sm:$0xf]
      %v230 = vld [vmem:[%s210 + $0x20] sm:$0xf]
      %v231 = vld [vmem:[%s210 + $0x24] sm:$0xf]
      %v232 = vunpack.c.l.bf16 %v222
      %v233 = vunpack.c.l.bf16 %v223
      %v234 = vunpack.c.l.bf16 %v224
      %v235 = vunpack.c.l.bf16 %v225
      %v236 = vunpack.c.l.bf16 %v226
      %v237 = vunpack.c.l.bf16 %v227
      %v238 = vunpack.c.l.bf16 %v228
      %v239 = vunpack.c.l.bf16 %v229
      %v240 = vunpack.c.l.bf16 %v230
      %v241 = vunpack.c.l.bf16 %v231
      %s242 = scalar_lea.vmem %s210, 48
      %v243 = vld [vmem:[%s242] sm:$0xf]
      %v244 = vld [vmem:[%s242 + $0x4] sm:$0xf]
      %v245 = vld [vmem:[%s242 + $0x8] sm:$0xf]
      %v246 = vld [vmem:[%s242 + $0xc] sm:$0xf]
      %v247 = vld [vmem:[%s242 + $0x10] sm:$0xf]
      %v248 = vld [vmem:[%s242 + $0x14] sm:$0xf]
      %v249 = vld [vmem:[%s242 + $0x18] sm:$0xf]
      %v250 = vld [vmem:[%s242 + $0x1c] sm:$0xf]
      %v251 = vld [vmem:[%s242 + $0x20] sm:$0xf]
      %v252 = vld [vmem:[%s242 + $0x24] sm:$0xf]
      %v253 = vunpack.c.l.bf16 %v243
      %v254 = vunpack.c.l.bf16 %v244
      %v255 = vunpack.c.l.bf16 %v245
      %v256 = vunpack.c.l.bf16 %v246
      %v257 = vunpack.c.l.bf16 %v247
      %v258 = vunpack.c.l.bf16 %v248
      %v259 = vunpack.c.l.bf16 %v249
      %v260 = vunpack.c.l.bf16 %v250
      %v261 = vunpack.c.l.bf16 %v251
      %v262 = vunpack.c.l.bf16 %v252
      %v263 = vld [vmem:[%s210 + $0x28] sm:$0x1]
      %v264 = vunpack.c.l.bf16 %v263
      %s265 = scalar_lea.vmem %s210, 96
      %v266 = vld [vmem:[%s265] sm:$0xf]
      %v267 = vld [vmem:[%s265 + $0x4] sm:$0xf]
      %v268 = vld [vmem:[%s265 + $0x8] sm:$0xf]
      %v269 = vld [vmem:[%s265 + $0xc] sm:$0xf]
      %v270 = vld [vmem:[%s265 + $0x10] sm:$0xf]
      %v271 = vld [vmem:[%s265 + $0x14] sm:$0xf]
      %v272 = vld [vmem:[%s265 + $0x18] sm:$0xf]
      %v273 = vld [vmem:[%s265 + $0x1c] sm:$0xf]
      %v274 = vld [vmem:[%s265 + $0x20] sm:$0xf]
      %v275 = vld [vmem:[%s265 + $0x24] sm:$0xf]
      %v276 = vunpack.c.l.bf16 %v266
      %v277 = vunpack.c.l.bf16 %v267
      %v278 = vunpack.c.l.bf16 %v268
      %v279 = vunpack.c.l.bf16 %v269
      %v280 = vunpack.c.l.bf16 %v270
      %v281 = vunpack.c.l.bf16 %v271
      %v282 = vunpack.c.l.bf16 %v272
      %v283 = vunpack.c.l.bf16 %v273
      %v284 = vunpack.c.l.bf16 %v274
      %v285 = vunpack.c.l.bf16 %v275
      %s286 = scalar_lea.vmem %s210, 144
      %v287 = vld [vmem:[%s286] sm:$0xf]
      %v288 = vld [vmem:[%s286 + $0x4] sm:$0xf]
      %v289 = vld [vmem:[%s286 + $0x8] sm:$0xf]
      %v290 = vld [vmem:[%s286 + $0xc] sm:$0xf]
      %v291 = vld [vmem:[%s286 + $0x10] sm:$0xf]
      %v292 = vld [vmem:[%s286 + $0x14] sm:$0xf]
      %v293 = vld [vmem:[%s286 + $0x18] sm:$0xf]
      %v294 = vld [vmem:[%s286 + $0x1c] sm:$0xf]
      %v295 = vld [vmem:[%s286 + $0x20] sm:$0xf]
      %v296 = vld [vmem:[%s286 + $0x24] sm:$0xf]
      %v297 = vunpack.c.l.bf16 %v287
      %v298 = vunpack.c.l.bf16 %v288
      %v299 = vunpack.c.l.bf16 %v289
      %v300 = vunpack.c.l.bf16 %v290
      %v301 = vunpack.c.l.bf16 %v291
      %v302 = vunpack.c.l.bf16 %v292
      %v303 = vunpack.c.l.bf16 %v293
      %v304 = vunpack.c.l.bf16 %v294
      %v305 = vunpack.c.l.bf16 %v295
      %v306 = vunpack.c.l.bf16 %v296
      %v307 = vld [vmem:[%s265 + $0x28] sm:$0x1]
      %v308 = vunpack.c.l.bf16 %v307
      %v309 = vld [vmem:[%s210 + $0x28] sm:$0xf]
      %v310 = vld [vmem:[%s210 + $0x2c] sm:$0x1]
      %v311 = vunpack.c.l.bf16 %v309
      %v312 = vunpack.c.l.bf16 %v310
      %v313 = vld [vmem:[%s242 + $0x28] sm:$0xf]
      %v314 = vld [vmem:[%s242 + $0x2c] sm:$0x1]
      %v315 = vunpack.c.l.bf16 %v313
      %v316 = vunpack.c.l.bf16 %v314
      %v317 = vld [vmem:[%s210 + $0x4] sm:$0xe]
      %v318 = vunpack.c.l.bf16 %v317
      %329 = vrot.lane.b32.xlu0 %v253, 4
      %v330 = vpop.permute.xlu0 %329
      %331 = vrot.lane.b32.xlu0 %v254, 4
      %v332 = vpop.permute.xlu0 %331
      %333 = vrot.lane.b32.xlu0 %v255, 4
      %v334 = vpop.permute.xlu0 %333
      %335 = vrot.lane.b32.xlu0 %v256, 4
      %v336 = vpop.permute.xlu0 %335
      %337 = vrot.lane.b32.xlu0 %v257, 4
      %v338 = vpop.permute.xlu0 %337
      %339 = vrot.lane.b32.xlu0 %v258, 4
      %v340 = vpop.permute.xlu0 %339
      %341 = vrot.lane.b32.xlu0 %v259, 4
      %v342 = vpop.permute.xlu0 %341
      %343 = vrot.lane.b32.xlu0 %v260, 4
      %v344 = vpop.permute.xlu0 %343
      %345 = vrot.lane.b32.xlu0 %v261, 4
      %v346 = vpop.permute.xlu0 %345
      %347 = vrot.lane.b32.xlu0 %v262, 4
      %v348 = vpop.permute.xlu0 %347
      %vm370 = vcmask 1046528
      %v371 = vrot.slane %v232, 1
      %v372 = vrot.slane %v233, 1
      %v373 = vsel %vm370, %v371, %v372
      %v374 = vrot.slane %v234, 1
      %v375 = vsel %vm370, %v372, %v374
      %v376 = vrot.slane %v235, 1
      %v377 = vsel %vm370, %v374, %v376
      %v378 = vrot.slane %v236, 1
      %v379 = vsel %vm370, %v376, %v378
      %v380 = vrot.slane %v237, 1
      %v381 = vsel %vm370, %v378, %v380
      %v382 = vrot.slane %v238, 1
      %v383 = vsel %vm370, %v380, %v382
      %v384 = vrot.slane %v239, 1
      %v385 = vsel %vm370, %v382, %v384
      %v386 = vrot.slane %v240, 1
      %v387 = vsel %vm370, %v384, %v386
      %v388 = vrot.slane %v241, 1
      %v389 = vsel %vm370, %v386, %v388
      %v390 = vrot.slane %v264, 1
      %v391 = vsel %vm370, %v388, %v390
      %392 = vrot.lane.b32.xlu0 %v373, 8
      %v393 = vpop.permute.xlu0 %392
      %394 = vrot.lane.b32.xlu0 %v375, 8
      %v395 = vpop.permute.xlu0 %394
      %396 = vrot.lane.b32.xlu0 %v377, 8
      %v397 = vpop.permute.xlu0 %396
      %398 = vrot.lane.b32.xlu0 %v379, 8
      %v399 = vpop.permute.xlu0 %398
      %400 = vrot.lane.b32.xlu0 %v381, 8
      %v401 = vpop.permute.xlu0 %400
      %402 = vrot.lane.b32.xlu0 %v383, 8
      %v403 = vpop.permute.xlu0 %402
      %404 = vrot.lane.b32.xlu0 %v385, 8
      %v405 = vpop.permute.xlu0 %404
      %406 = vrot.lane.b32.xlu0 %v387, 8
      %v407 = vpop.permute.xlu0 %406
      %408 = vrot.lane.b32.xlu0 %v389, 8
      %v409 = vpop.permute.xlu0 %408
      %410 = vrot.lane.b32.xlu0 %v391, 8
      %v411 = vpop.permute.xlu0 %410
      %432 = vrot.lane.b32.xlu0 %v276, 12
      %v433 = vpop.permute.xlu0 %432
      %434 = vrot.lane.b32.xlu0 %v277, 12
      %v435 = vpop.permute.xlu0 %434
      %436 = vrot.lane.b32.xlu0 %v278, 12
      %v437 = vpop.permute.xlu0 %436
      %438 = vrot.lane.b32.xlu0 %v279, 12
      %v439 = vpop.permute.xlu0 %438
      %440 = vrot.lane.b32.xlu0 %v280, 12
      %v441 = vpop.permute.xlu0 %440
      %442 = vrot.lane.b32.xlu0 %v281, 12
      %v443 = vpop.permute.xlu0 %442
      %444 = vrot.lane.b32.xlu0 %v282, 12
      %v445 = vpop.permute.xlu0 %444
      %446 = vrot.lane.b32.xlu0 %v283, 12
      %v447 = vpop.permute.xlu0 %446
      %448 = vrot.lane.b32.xlu0 %v284, 12
      %v449 = vpop.permute.xlu0 %448
      %450 = vrot.lane.b32.xlu0 %v285, 12
      %v451 = vpop.permute.xlu0 %450
      %472 = vrot.lane.b32.xlu0 %v297, 16
      %v473 = vpop.permute.xlu0 %472
      %474 = vrot.lane.b32.xlu0 %v298, 16
      %v475 = vpop.permute.xlu0 %474
      %476 = vrot.lane.b32.xlu0 %v299, 16
      %v477 = vpop.permute.xlu0 %476
      %478 = vrot.lane.b32.xlu0 %v300, 16
      %v479 = vpop.permute.xlu0 %478
      %480 = vrot.lane.b32.xlu0 %v301, 16
      %v481 = vpop.permute.xlu0 %480
      %482 = vrot.lane.b32.xlu0 %v302, 16
      %v483 = vpop.permute.xlu0 %482
      %484 = vrot.lane.b32.xlu0 %v303, 16
      %v485 = vpop.permute.xlu0 %484
      %486 = vrot.lane.b32.xlu0 %v304, 16
      %v487 = vpop.permute.xlu0 %486
      %488 = vrot.lane.b32.xlu0 %v305, 16
      %v489 = vpop.permute.xlu0 %488
      %490 = vrot.lane.b32.xlu0 %v306, 16
      %v491 = vpop.permute.xlu0 %490
      %v503 = vrot.slane %v276, 1
      %v504 = vrot.slane %v277, 1
      %v505 = vsel %vm370, %v503, %v504
      %v506 = vrot.slane %v278, 1
      %v507 = vsel %vm370, %v504, %v506
      %v508 = vrot.slane %v279, 1
      %v509 = vsel %vm370, %v506, %v508
      %v510 = vrot.slane %v280, 1
      %v511 = vsel %vm370, %v508, %v510
      %v512 = vrot.slane %v281, 1
      %v513 = vsel %vm370, %v510, %v512
      %v514 = vrot.slane %v282, 1
      %v515 = vsel %vm370, %v512, %v514
      %v516 = vrot.slane %v283, 1
      %v517 = vsel %vm370, %v514, %v516
      %v518 = vrot.slane %v284, 1
      %v519 = vsel %vm370, %v516, %v518
      %v520 = vrot.slane %v285, 1
      %v521 = vsel %vm370, %v518, %v520
      %v522 = vrot.slane %v308, 1
      %v523 = vsel %vm370, %v520, %v522
      %524 = vrot.lane.b32.xlu0 %v505, 20
      %v525 = vpop.permute.xlu0 %524
      %526 = vrot.lane.b32.xlu0 %v507, 20
      %v527 = vpop.permute.xlu0 %526
      %528 = vrot.lane.b32.xlu0 %v509, 20
      %v529 = vpop.permute.xlu0 %528
      %530 = vrot.lane.b32.xlu0 %v511, 20
      %v531 = vpop.permute.xlu0 %530
      %532 = vrot.lane.b32.xlu0 %v513, 20
      %v533 = vpop.permute.xlu0 %532
      %534 = vrot.lane.b32.xlu0 %v515, 20
      %v535 = vpop.permute.xlu0 %534
      %536 = vrot.lane.b32.xlu0 %v517, 20
      %v537 = vpop.permute.xlu0 %536
      %538 = vrot.lane.b32.xlu0 %v519, 20
      %v539 = vpop.permute.xlu0 %538
      %540 = vrot.lane.b32.xlu0 %v521, 20
      %v541 = vpop.permute.xlu0 %540
      %542 = vrot.lane.b32.xlu0 %v523, 20
      %v543 = vpop.permute.xlu0 %542
      %v556 = vrot.slane %v311, 1
      %v557 = vsel %vm370, %v388, %v556
      %v558 = vrot.slane %v312, 1
      %v559 = vsel %vm370, %v556, %v558
      %560 = vrot.lane.b32.xlu0 %v375, 24
      %v561 = vpop.permute.xlu0 %560
      %562 = vrot.lane.b32.xlu0 %v377, 24
      %v563 = vpop.permute.xlu0 %562
      %564 = vrot.lane.b32.xlu0 %v379, 24
      %v565 = vpop.permute.xlu0 %564
      %566 = vrot.lane.b32.xlu0 %v381, 24
      %v567 = vpop.permute.xlu0 %566
      %568 = vrot.lane.b32.xlu0 %v383, 24
      %v569 = vpop.permute.xlu0 %568
      %570 = vrot.lane.b32.xlu0 %v385, 24
      %v571 = vpop.permute.xlu0 %570
      %572 = vrot.lane.b32.xlu0 %v387, 24
      %v573 = vpop.permute.xlu0 %572
      %574 = vrot.lane.b32.xlu0 %v389, 24
      %v575 = vpop.permute.xlu0 %574
      %576 = vrot.lane.b32.xlu0 %v557, 24
      %v577 = vpop.permute.xlu0 %576
      %578 = vrot.lane.b32.xlu0 %v559, 24
      %v579 = vpop.permute.xlu0 %578
      %v592 = vrot.slane %v254, 1
      %v593 = vrot.slane %v255, 1
      %v594 = vsel %vm370, %v592, %v593
      %v595 = vrot.slane %v256, 1
      %v596 = vsel %vm370, %v593, %v595
      %v597 = vrot.slane %v257, 1
      %v598 = vsel %vm370, %v595, %v597
      %v599 = vrot.slane %v258, 1
      %v600 = vsel %vm370, %v597, %v599
      %v601 = vrot.slane %v259, 1
      %v602 = vsel %vm370, %v599, %v601
      %v603 = vrot.slane %v260, 1
      %v604 = vsel %vm370, %v601, %v603
      %v605 = vrot.slane %v261, 1
      %v606 = vsel %vm370, %v603, %v605
      %v607 = vrot.slane %v262, 1
      %v608 = vsel %vm370, %v605, %v607
      %v609 = vrot.slane %v315, 1
      %v610 = vsel %vm370, %v607, %v609
      %v611 = vrot.slane %v316, 1
      %v612 = vsel %vm370, %v609, %v611
      %613 = vrot.lane.b32.xlu0 %v594, 28
      %v614 = vpop.permute.xlu0 %613
      %615 = vrot.lane.b32.xlu0 %v596, 28
      %v616 = vpop.permute.xlu0 %615
      %617 = vrot.lane.b32.xlu0 %v598, 28
      %v618 = vpop.permute.xlu0 %617
      %619 = vrot.lane.b32.xlu0 %v600, 28
      %v620 = vpop.permute.xlu0 %619
      %621 = vrot.lane.b32.xlu0 %v602, 28
      %v622 = vpop.permute.xlu0 %621
      %623 = vrot.lane.b32.xlu0 %v604, 28
      %v624 = vpop.permute.xlu0 %623
      %625 = vrot.lane.b32.xlu0 %v606, 28
      %v626 = vpop.permute.xlu0 %625
      %627 = vrot.lane.b32.xlu0 %v608, 28
      %v628 = vpop.permute.xlu0 %627
      %629 = vrot.lane.b32.xlu0 %v610, 28
      %v630 = vpop.permute.xlu0 %629
      %631 = vrot.lane.b32.xlu0 %v612, 28
      %v632 = vpop.permute.xlu0 %631
      %vm644 = vcmask 1045504
      %v645 = vrot.slane %v318, 2
      %v646 = vrot.slane %v234, 2
      %v647 = vsel %vm644, %v645, %v646
      %v648 = vrot.slane %v235, 2
      %v649 = vsel %vm644, %v646, %v648
      %v650 = vrot.slane %v236, 2
      %v651 = vsel %vm644, %v648, %v650
      %v652 = vrot.slane %v237, 2
      %v653 = vsel %vm644, %v650, %v652
      %v654 = vrot.slane %v238, 2
      %v655 = vsel %vm644, %v652, %v654
      %v656 = vrot.slane %v239, 2
      %v657 = vsel %vm644, %v654, %v656
      %v658 = vrot.slane %v240, 2
      %v659 = vsel %vm644, %v656, %v658
      %v660 = vrot.slane %v241, 2
      %v661 = vsel %vm644, %v658, %v660
      %v662 = vrot.slane %v311, 2
      %v663 = vsel %vm644, %v660, %v662
      %v664 = vrot.slane %v312, 2
      %v665 = vsel %vm644, %v662, %v664
      %666 = vrot.lane.b32.xlu0 %v647, 32
      %v667 = vpop.permute.xlu0 %666
      %668 = vrot.lane.b32.xlu0 %v649, 32
      %v669 = vpop.permute.xlu0 %668
      %670 = vrot.lane.b32.xlu0 %v651, 32
      %v671 = vpop.permute.xlu0 %670
      %672 = vrot.lane.b32.xlu0 %v653, 32
      %v673 = vpop.permute.xlu0 %672
      %674 = vrot.lane.b32.xlu0 %v655, 32
      %v675 = vpop.permute.xlu0 %674
      %676 = vrot.lane.b32.xlu0 %v657, 32
      %v677 = vpop.permute.xlu0 %676
      %678 = vrot.lane.b32.xlu0 %v659, 32
      %v679 = vpop.permute.xlu0 %678
      %680 = vrot.lane.b32.xlu0 %v661, 32
      %v681 = vpop.permute.xlu0 %680
      %682 = vrot.lane.b32.xlu0 %v663, 32
      %v683 = vpop.permute.xlu0 %682
      %684 = vrot.lane.b32.xlu0 %v665, 32
      %v685 = vpop.permute.xlu0 %684
      %vm696 = vcmask 31744
      %v697 = vsel %vm696, %v232, %v330
      %v698 = vsel %vm696, %v233, %v332
      %v699 = vsel %vm696, %v234, %v334
      %v700 = vsel %vm696, %v235, %v336
      %v701 = vsel %vm696, %v236, %v338
      %v702 = vsel %vm696, %v237, %v340
      %v703 = vsel %vm696, %v238, %v342
      %v704 = vsel %vm696, %v239, %v344
      %v705 = vsel %vm696, %v240, %v346
      %v706 = vsel %vm696, %v241, %v348
      %vm707 = vcmask 64512
      %v708 = vsel %vm707, %v697, %v393
      %v709 = vsel %vm707, %v698, %v395
      %v710 = vsel %vm707, %v699, %v397
      %v711 = vsel %vm707, %v700, %v399
      %v712 = vsel %vm707, %v701, %v401
      %v713 = vsel %vm707, %v702, %v403
      %v714 = vsel %vm707, %v703, %v405
      %v715 = vsel %vm707, %v704, %v407
      %v716 = vsel %vm707, %v705, %v409
      %v717 = vsel %vm707, %v706, %v411
      %vm718 = vcmask 97280
      %v719 = vsel %vm718, %v708, %v433
      %v720 = vsel %vm718, %v709, %v435
      %v721 = vsel %vm718, %v710, %v437
      %v722 = vsel %vm718, %v711, %v439
      %v723 = vsel %vm718, %v712, %v441
      %v724 = vsel %vm718, %v713, %v443
      %v725 = vsel %vm718, %v714, %v445
      %v726 = vsel %vm718, %v715, %v447
      %v727 = vsel %vm718, %v716, %v449
      %v728 = vsel %vm718, %v717, %v451
      %vm729 = vcmask 130048
      %v730 = vsel %vm729, %v719, %v473
      %v731 = vsel %vm729, %v720, %v475
      %v732 = vsel %vm729, %v721, %v477
      %v733 = vsel %vm729, %v722, %v479
      %v734 = vsel %vm729, %v723, %v481
      %v735 = vsel %vm729, %v724, %v483
      %v736 = vsel %vm729, %v725, %v485
      %v737 = vsel %vm729, %v726, %v487
      %v738 = vsel %vm729, %v727, %v489
      %v739 = vsel %vm729, %v728, %v491
      %vm740 = vcmask 162816
      %v741 = vsel %vm740, %v730, %v525
      %v742 = vsel %vm740, %v731, %v527
      %v743 = vsel %vm740, %v732, %v529
      %v744 = vsel %vm740, %v733, %v531
      %v745 = vsel %vm740, %v734, %v533
      %v746 = vsel %vm740, %v735, %v535
      %v747 = vsel %vm740, %v736, %v537
      %v748 = vsel %vm740, %v737, %v539
      %v749 = vsel %vm740, %v738, %v541
      %v750 = vsel %vm740, %v739, %v543
      %vm751 = vcmask 195584
      %v752 = vsel %vm751, %v741, %v561
      %v753 = vsel %vm751, %v742, %v563
      %v754 = vsel %vm751, %v743, %v565
      %v755 = vsel %vm751, %v744, %v567
      %v756 = vsel %vm751, %v745, %v569
      %v757 = vsel %vm751, %v746, %v571
      %v758 = vsel %vm751, %v747, %v573
      %v759 = vsel %vm751, %v748, %v575
      %v760 = vsel %vm751, %v749, %v577
      %v761 = vsel %vm751, %v750, %v579
      %vm762 = vcmask 228352
      %v763 = vsel %vm762, %v752, %v614
      %v764 = vsel %vm762, %v753, %v616
      %v765 = vsel %vm762, %v754, %v618
      %v766 = vsel %vm762, %v755, %v620
      %v767 = vsel %vm762, %v756, %v622
      %v768 = vsel %vm762, %v757, %v624
      %v769 = vsel %vm762, %v758, %v626
      %v770 = vsel %vm762, %v759, %v628
      %v771 = vsel %vm762, %v760, %v630
      %v772 = vsel %vm762, %v761, %v632
      %vm773 = vcmask 261120
      %v774 = vsel %vm773, %v763, %v667
      %v775 = vsel %vm773, %v764, %v669
      %v776 = vsel %vm773, %v765, %v671
      %v777 = vsel %vm773, %v766, %v673
      %v778 = vsel %vm773, %v767, %v675
      %v779 = vsel %vm773, %v768, %v677
      %v780 = vsel %vm773, %v769, %v679
      %v781 = vsel %vm773, %v770, %v681
      %v782 = vsel %vm773, %v771, %v683
      %v783 = vsel %vm773, %v772, %v685
      %v784 = vpack.c.bf16 %v775, %v774
      %v785 = vpack.c.bf16 %v777, %v776
      %v786 = vpack.c.bf16 %v779, %v778
      %v787 = vpack.c.bf16 %v781, %v780
      %v788 = vpack.c.bf16 %v783, %v782
      %v789 = vld [vmem:[%s1] sm:$0xf]
      %v790 = vld [vmem:[%s1 + $0x4] sm:$0xf]
      %v791 = vld [vmem:[%s1 + $0x8] sm:$0xf]
      %v792 = vld [vmem:[%s1 + $0xc] sm:$0xf]
      %v793 = vld [vmem:[%s1 + $0x10] sm:$0x3]
      %v799 = vunpack.c.l.b16 %v789
      %v800 = vunpack.c.l.b16 %v790
      %v801 = vunpack.c.l.b16 %v791
      %v802 = vunpack.c.l.b16 %v792
      %v803 = vunpack.c.l.b16 %v793
      %v804 = vpack.c.b16 %v800, %v799
      %v805 = vpack.c.b16 %v802, %v801
      %v806 = vpack.c.b16 %v803, %v803
      %vm809 = vcmask 293888
      %v811 = vsel %vm809, %v784, 0
      %v814 = vsel %vm809, %v785, 0
      %v817 = vsel %vm809, %v786, 0
      %v820 = vsel %vm809, %v787, 0
      %v823 = vsel %vm809, %v788, 0
      %vm825 = vcmask 1041408
      %v827 = vsel %vm825, %v806, 0
      %829 = vmatprep.subr.bf16.mxu0 0
      %830 = vmatpush1.bf16.msra.mxu0 0
      %831 = vmatprep.subr.bf16.mxu0 0
      %832 = vmatpush1.bf16.msra.mxu0 0
      %833 = vmatprep.subr.bf16.mxu0 0
      %834 = vmatpush1.bf16.msra.mxu0 0
      %835 = vmatprep.subr.bf16.mxu0 0
      %836 = vmatpush1.bf16.msra.mxu0 0
      %837 = vmatprep.subr.bf16.mxu0 0
      %838 = vmatpush1.bf16.msra.mxu0 0
      %839 = vmatprep.subr.bf16.mxu0 0
      %840 = vmatpush1.bf16.msra.mxu0 %v827
      %841 = vmatprep.subr.bf16.mxu0 0
      %842 = vmatpush1.bf16.msra.mxu0 %v805
      %843 = vmatprep.subr.bf16.mxu0 0
      %844 = vmatpush1.bf16.msra.mxu0 %v804
      %845 = vmatprep.subr.bf16.mxu0 0
      %846 = vmatpush2.bf16.msra.mxu0 0
      %847 = vmatprep.subr.bf16.mxu0 0
      %848 = vmatpush2.bf16.msra.mxu0 0
      %849 = vmatprep.subr.bf16.mxu0 0
      %850 = vmatpush2.bf16.msra.mxu0 0
      %851 = vmatprep.subr.bf16.mxu0 0
      %852 = vmatpush2.bf16.msra.mxu0 0
      %853 = vmatprep.subr.bf16.mxu0 0
      %854 = vmatpush2.bf16.msra.mxu0 0
      %855 = vmatprep.subr.bf16.mxu0 0
      %856 = vmatpush2.bf16.msra.mxu0 0
      %857 = vmatprep.subr.bf16.mxu0 0
      %858 = vmatpush2.bf16.msra.mxu0 0
      %859 = vmatprep.subr.bf16.mxu0 0
      %860 = vmatpush2.bf16.msra.mxu0 0
      %861 = vmatprep.mubr.bf16.mxu0 0
      %862 = vmatmul.mubr.bf16.gmra.mxu0 %v811
      %v863 = vpop.f32.mrf.mxu0
      %v864 = vadd.f32 0.0, %v863
      %v865 = vpop.f32.mrf.mxu0
      %v866 = vpop.f32.mrf.mxu0
      %v867 = vadd.f32 0.0, %v866
      %v868 = vpop.f32.mrf.mxu0
      %869 = vmatprep.mubr.bf16.mxu0 0
      %870 = vmatmul.mubr.bf16.gmra.mxu0 %v814
      %v871 = vpop.f32.mrf.mxu0
      %v872 = vadd.f32 0.0, %v871
      %v873 = vpop.f32.mrf.mxu0
      %v874 = vpop.f32.mrf.mxu0
      %v875 = vadd.f32 0.0, %v874
      %v876 = vpop.f32.mrf.mxu0
      %877 = vmatprep.mubr.bf16.mxu0 0
      %878 = vmatmul.mubr.bf16.gmra.mxu0 %v817
      %v879 = vpop.f32.mrf.mxu0
      %v880 = vadd.f32 0.0, %v879
      %v881 = vpop.f32.mrf.mxu0
      %v882 = vpop.f32.mrf.mxu0
      %v883 = vadd.f32 0.0, %v882
      %v884 = vpop.f32.mrf.mxu0
      %885 = vmatprep.mubr.bf16.mxu0 0
      %886 = vmatmul.mubr.bf16.gmra.mxu0 %v820
      %v887 = vpop.f32.mrf.mxu0
      %v888 = vadd.f32 0.0, %v887
      %v889 = vpop.f32.mrf.mxu0
      %v890 = vpop.f32.mrf.mxu0
      %v891 = vadd.f32 0.0, %v890
      %v892 = vpop.f32.mrf.mxu0
      %893 = vmatprep.mubr.bf16.mxu0 0
      %894 = vmatmul.mubr.bf16.gmra.mxu0 %v823
      %v895 = vpop.f32.mrf.mxu0
      %v896 = vadd.f32 0.0, %v895
      %v897 = vpop.f32.mrf.mxu0
      %v898 = vpop.f32.mrf.mxu0
      %v899 = vadd.f32 0.0, %v898
      %v900 = vpop.f32.mrf.mxu0
      %901 = vdwg.mxu0
      %v902 = vld [vmem:[%s2] sm:$0x1]
      %v904 = vlaneseq
      %v905 = vshrl.u32 %v904, 7
      %v906 = vsub.s32 0, %v905
      %v907 = vrot.slane %v902, %v906
      %v909 = vmul.f32 %v864, %v907
      %v910 = vmul.f32 %v867, %v907
      %v911 = vmul.f32 %v872, %v907
      %v912 = vmul.f32 %v875, %v907
      %v913 = vmul.f32 %v880, %v907
      %v914 = vmul.f32 %v883, %v907
      %v915 = vmul.f32 %v888, %v907
      %v916 = vmul.f32 %v891, %v907
      %v917 = vmul.f32 %v896, %v907
      %v918 = vmul.f32 %v899, %v907
      %v919 = vld [vmem:[%s3] sm:$0x1]
      %v921 = vlaneseq
      %v922 = vshrl.u32 %v921, 7
      %v923 = vsub.s32 0, %v922
      %v924 = vrot.slane %v919, %v923
      %v926 = vadd.f32 %v909, %v924
      %v927 = vadd.f32 %v910, %v924
      %v928 = vadd.f32 %v911, %v924
      %v929 = vadd.f32 %v912, %v924
      %v930 = vadd.f32 %v913, %v924
      %v931 = vadd.f32 %v914, %v924
      %v932 = vadd.f32 %v915, %v924
      %v933 = vadd.f32 %v916, %v924
      %v934 = vadd.f32 %v917, %v924
      %v935 = vadd.f32 %v918, %v924
      %v936 = vmax.f32 %v926, 0.0
      %v937 = vmax.f32 %v927, 0.0
      %v938 = vmax.f32 %v928, 0.0
      %v939 = vmax.f32 %v929, 0.0
      %v940 = vmax.f32 %v930, 0.0
      %v941 = vmax.f32 %v931, 0.0
      %v942 = vmax.f32 %v932, 0.0
      %v943 = vmax.f32 %v933, 0.0
      %v944 = vmax.f32 %v934, 0.0
      %v945 = vmax.f32 %v935, 0.0
      %v946 = vpack.c.bf16 %v937, %v936
      %v947 = vpack.c.bf16 %v939, %v938
      %v948 = vpack.c.bf16 %v941, %v940
      %v949 = vpack.c.bf16 %v943, %v942
      %v950 = vpack.c.bf16 %v945, %v944
      %v956 = vunpack.c.l.b16 %v946
      %v957 = vunpack.c.h.b16 %v946
      %v958 = vunpack.c.l.b16 %v947
      %v959 = vunpack.c.h.b16 %v947
      %v960 = vunpack.c.l.b16 %v948
      %v961 = vunpack.c.h.b16 %v948
      %v962 = vunpack.c.l.b16 %v949
      %v963 = vunpack.c.h.b16 %v949
      %v964 = vunpack.c.l.b16 %v950
      %v965 = vunpack.c.h.b16 %v950
      %v966 = vpack.c.b16 %v956, %v956
      %v967 = vpack.c.b16 %v957, %v957
      %v968 = vpack.c.b16 %v958, %v958
      %v969 = vpack.c.b16 %v959, %v959
      %v970 = vpack.c.b16 %v960, %v960
      %v971 = vpack.c.b16 %v961, %v961
      %v972 = vpack.c.b16 %v962, %v962
      %v973 = vpack.c.b16 %v963, %v963
      %v974 = vpack.c.b16 %v964, %v964
      %v975 = vpack.c.b16 %v965, %v965
      %986 = vst [vmem:[%s219] sm:$0xf] %v966
      %987 = vst [vmem:[%s219 + $0x4] sm:$0xf] %v967
      %988 = vst [vmem:[%s219 + $0x8] sm:$0xf] %v968
      %989 = vst [vmem:[%s219 + $0xc] sm:$0xf] %v969
      %990 = vst [vmem:[%s219 + $0x10] sm:$0xf] %v970
      %991 = vst [vmem:[%s219 + $0x14] sm:$0xf] %v971
      %992 = vst [vmem:[%s219 + $0x18] sm:$0xf] %v972
      %993 = vst [vmem:[%s219 + $0x1c] sm:$0xf] %v973
      %994 = vst [vmem:[%s219 + $0x20] sm:$0xf] %v974
      %995 = vst [vmem:[%s219 + $0x24] sm:$0xf] %v975
      %s996 = smul.u32 10, %s20
      %p997 = scmp.lt.s32.totalorder %s19, 1
      %s998 = scalar_select %p997, %s19, 1
      %p999 = scmp.lt.s32.totalorder %s996, 9
      %s1000 = scalar_select %p999, %s996, 9
      %s1001 = smul.addr %s998, 10
      %s1002 = sadd.s32 %s1000, %s1001
      %s1003 = smul.addr %s1002, 4
      %s1004 = scalar_lea.vmem %s4, %s1003
      // Predicated region
      $region37: #{resnet_block_forward.2} parent=35 // pred_check
        %p1005 = pneg %p136
      $region38: #{resnet_block_forward.2} parent=35 // pred_check_branch
        %1007 = sbr.rel (%p1005) target = $region40
      $region39: #{resnet_block_forward.2} parent=35 // pred_region
        %s1008 = smul.u32 10, %s20
      $region40: #{resnet_block_forward.2} parent=35 // pred_fallthru
        _
    $region36: #{resnet_block_forward.2} parent=5 // pred_fallthru
      _
    %p1009 = scmp.le.s32.totalorder 2, %s10
    // Predicated region
    $region41: #{resnet_block_forward.2} parent=5 // pred_check
      %p1010 = pneg %p1009
    $region42: #{resnet_block_forward.2} parent=5 // pred_check_branch
      %1012 = sbr.rel (%p1010) target = $region44
    $region43: #{resnet_block_forward.2} parent=5 // pred_region
      %s1013 = ssub.s32 %s10, 2
      // Predicated region
      $region45: #{resnet_block_forward.2} parent=43 // pred_check
        %p1014 = pneg %p142
      $region46: #{resnet_block_forward.2} parent=43 // pred_check_branch
        %1016 = sbr.rel (%p1014) target = $region48
      $region47: #{resnet_block_forward.2} parent=43 // pred_region
        %s1017 = smul.u32 10, %s22
        %p1018 = scmp.lt.s32.totalorder %s21, 1
        %s1019 = scalar_select %p1018, %s21, 1
        %p1020 = scmp.lt.s32.totalorder %s1017, 9
        %s1021 = scalar_select %p1020, %s1017, 9
        %s1022 = smul.addr %s1019, 10
        %s1023 = sadd.s32 %s1021, %s1022
        %s1024 = smul.addr %s1023, 4
        %s1025 = scalar_lea.vmem %s4, %s1024
      $region48: #{resnet_block_forward.2} parent=43 // pred_fallthru
        _
    $region44: #{resnet_block_forward.2} parent=5 // pred_fallthru
      _
  $region6: #{resnet_block_forward.2} parent=0 // loop_footer
    %s14 = sadd.s32 1, %s10
  $region7: #{resnet_block_forward.2} parent=0 // loop_footer_branch
    %9 = sbr.rel target = $region3
  $region8: #{resnet_block_forward.2} parent=0 // loop_exit
    _

// kernel: resnet_block_forward.3
$region0: #{resnet_block_forward.3}
  #allocation0 [shape = 'u32[]', space=smem, size = 0x4, offset = 0x4, fixed_abs, tag = 'smem constant byte address 0x4 - core index']
  #allocation1 [shape = 'u32[144,128]{1,0:T(1,128)}', space=vmem, size = 0x12000, scoped, tag = 'internal scratch']
  %s0 = inlined_call_operand.vmem [shape: bf16[2,1,104,8], index: 0, kind: input, shape index: {}]
  %s1 = inlined_call_operand.vmem [shape: bf16[72,128], index: 1, kind: input, shape index: {}]
  %s2 = inlined_call_operand.vmem [shape: f32[1,128], index: 2, kind: input, shape index: {}]
  %s3 = inlined_call_operand.vmem [shape: f32[1,128], index: 3, kind: input, shape index: {}]
  %s4 = inlined_call_operand.vmem [shape: bf16[2,80,4], index: 4, kind: input, shape index: {}]
  %s5 = inlined_call_operand.vmem [shape: bf16[4,128], index: 5, kind: input, shape index: {}]
  %s6 = inlined_call_operand.vmem [shape: f32[2,80,128], index: 6, kind: output, shape index: {}]
  %s7 = sld [smem:[#allocation0]]
  $region57: #{resnet_block_forward.3} parent=0
    _
  %s9 = ssub.s32 1, %s7
  %s10 = scalar_select 0, %s9, %s7
  loop: start=0, step=1, limit=4
  $region2: #{resnet_block_forward.3} parent=0 // loop_pre_header
    _
  $region3: #{resnet_block_forward.3} parent=0 // loop_header
    %s12 = sphi 0, %s16
    %p13 = scmp.ge.s32.totalorder %s12, 4
    %s19 = sphi 0, %s31
    %s20 = sphi 0, %s27
    %s21 = sphi 0, %s19
    %s22 = sphi 0, %s20
    %s23 = sphi 0, %s21
    %s24 = sphi 0, %s22
    %s34 = sphi 0, %s36
    %s37 = sphi 0, %s34
    %s38 = sphi 0, %s37
    %s54 = sphi 0, %s38
    %s58 = sphi 0, %s58
    %s60 = sphi 0, %s58
    %s61 = sphi 0, %s60
    %s75 = sphi 0, %s61
    %s79 = sphi 0, %s79
    %s81 = sphi 0, %s79
    %s82 = sphi 0, %s81
    %s96 = sphi 0, %s82
    %s100 = sphi 0, %s100
    %s102 = sphi 0, %s100
    %s103 = sphi 0, %s102
    %s117 = sphi 0, %s103
    %s125 = sphi 0, %s127
    %s128 = sphi 0, %s125
    %s129 = sphi 0, %s128
    %s145 = sphi 0, %s129
    %s149 = sphi 0, %s149
    %s151 = sphi 0, %s149
    %s152 = sphi 0, %s151
    %s166 = sphi 0, %s152
    %s174 = sphi 0, %s176
    %s177 = sphi 0, %s174
    %s178 = sphi 0, %s177
    %s194 = sphi 0, %s178
  $region4: #{resnet_block_forward.3} parent=0 // loop_header_branch
    %15 = sbr.rel (%p13) target = $region8
  $region5: #{resnet_block_forward.3} parent=0 // loop_body
    %s17 = ssub.s32 %s12, 1
    %s18 = ssub.s32 %s12, 2
    %s25 = sadd.s32 1, %s20
    %p26 = scmp.ge.s32.totalorder %s25, 1
    %s27 = scalar_select %p26, 0, %s25
    %s28 = sadd.s32 1, %s19
    %s29 = scalar_select %p26, %s28, %s19
    %p30 = scmp.ge.s32.totalorder %s29, 2
    %s31 = scalar_select %p30, 0, %s29
    %s32 = ssub.s32 %s19, %s31
    %p33 = scmp.eq.s32.totalorder %s32, 0
    %s35 = sadd.s32 %s34, 1
    %s36 = scalar_select %p33, %s34, %s35
    %p39 = pneg %p33
    %p40 = scmp.eq.s32.totalorder %s12, 1
    %p41 = por %p39, %p40
    %p42 = scmp.ne.s32.totalorder %s34, %s37
    %p43 = scmp.eq.s32.totalorder %s12, 0
    %p44 = por %p42, %p43
    %p45 = scmp.ne.s32.totalorder %s34, %s37
    %p46 = scmp.eq.s32.totalorder %s17, 1
    %p47 = por %p45, %p46
    %p48 = scmp.ne.s32.totalorder %s37, %s38
    %p49 = scmp.eq.s32.totalorder %s17, 0
    %p50 = por %p48, %p49
    %p51 = scmp.ne.s32.totalorder %s37, %s38
    %p52 = scmp.eq.s32.totalorder %s18, 1
    %p53 = por %p51, %p52
    %p55 = scmp.ne.s32.totalorder %s38, %s54
    %p56 = scmp.eq.s32.totalorder %s18, 0
    %p57 = por %p55, %p56
    %s59 = sadd.s32 %s58, 1
    %p62 = scmp.eq.s32.totalorder %s12, 1
    %p63 = scmp.ne.s32.totalorder %s58, %s60
    %p64 = scmp.eq.s32.totalorder %s12, 0
    %p65 = por %p63, %p64
    %p66 = scmp.ne.s32.totalorder %s58, %s60
    %p67 = scmp.eq.s32.totalorder %s17, 1
    %p68 = por %p66, %p67
    %p69 = scmp.ne.s32.totalorder %s60, %s61
    %p70 = scmp.eq.s32.totalorder %s17, 0
    %p71 = por %p69, %p70
    %p72 = scmp.ne.s32.totalorder %s60, %s61
    %p73 = scmp.eq.s32.totalorder %s18, 1
    %p74 = por %p72, %p73
    %p76 = scmp.ne.s32.totalorder %s61, %s75
    %p77 = scmp.eq.s32.totalorder %s18, 0
    %p78 = por %p76, %p77
    %s80 = sadd.s32 %s79, 1
    %p83 = scmp.eq.s32.totalorder %s12, 1
    %p84 = scmp.ne.s32.totalorder %s79, %s81
    %p85 = scmp.eq.s32.totalorder %s12, 0
    %p86 = por %p84, %p85
    %p87 = scmp.ne.s32.totalorder %s79, %s81
    %p88 = scmp.eq.s32.totalorder %s17, 1
    %p89 = por %p87, %p88
    %p90 = scmp.ne.s32.totalorder %s81, %s82
    %p91 = scmp.eq.s32.totalorder %s17, 0
    %p92 = por %p90, %p91
    %p93 = scmp.ne.s32.totalorder %s81, %s82
    %p94 = scmp.eq.s32.totalorder %s18, 1
    %p95 = por %p93, %p94
    %p97 = scmp.ne.s32.totalorder %s82, %s96
    %p98 = scmp.eq.s32.totalorder %s18, 0
    %p99 = por %p97, %p98
    %s101 = sadd.s32 %s100, 1
    %p104 = scmp.eq.s32.totalorder %s12, 1
    %p105 = scmp.ne.s32.totalorder %s100, %s102
    %p106 = scmp.eq.s32.totalorder %s12, 0
    %p107 = por %p105, %p106
    %p108 = scmp.ne.s32.totalorder %s100, %s102
    %p109 = scmp.eq.s32.totalorder %s17, 1
    %p110 = por %p108, %p109
    %p111 = scmp.ne.s32.totalorder %s102, %s103
    %p112 = scmp.eq.s32.totalorder %s17, 0
    %p113 = por %p111, %p112
    %p114 = scmp.ne.s32.totalorder %s102, %s103
    %p115 = scmp.eq.s32.totalorder %s18, 1
    %p116 = por %p114, %p115
    %p118 = scmp.ne.s32.totalorder %s103, %s117
    %p119 = scmp.eq.s32.totalorder %s18, 0
    %p120 = por %p118, %p119
    %s121 = ssub.s32 %s19, %s31
    %s122 = ssub.s32 %s20, %s27
    %s123 = sor.u32 %s121, %s122
    %p124 = scmp.eq.s32.totalorder %s123, 0
    %s126 = sadd.s32 %s125, 1
    %s127 = scalar_select %p124, %s125, %s126
    %p130 = pneg %p124
    %p131 = scmp.eq.s32.totalorder %s12, 1
    %p132 = por %p130, %p131
    %p133 = scmp.ne.s32.totalorder %s125, %s128
    %p134 = scmp.eq.s32.totalorder %s12, 0
    %p135 = por %p133, %p134
    %p136 = scmp.ne.s32.totalorder %s125, %s128
    %p137 = scmp.eq.s32.totalorder %s17, 1
    %p138 = por %p136, %p137
    %p139 = scmp.ne.s32.totalorder %s128, %s129
    %p140 = scmp.eq.s32.totalorder %s17, 0
    %p141 = por %p139, %p140
    %p142 = scmp.ne.s32.totalorder %s128, %s129
    %p143 = scmp.eq.s32.totalorder %s18, 1
    %p144 = por %p142, %p143
    %p146 = scmp.ne.s32.totalorder %s129, %s145
    %p147 = scmp.eq.s32.totalorder %s18, 0
    %p148 = por %p146, %p147
    %s150 = sadd.s32 %s149, 1
    %p153 = scmp.eq.s32.totalorder %s12, 1
    %p154 = scmp.ne.s32.totalorder %s149, %s151
    %p155 = scmp.eq.s32.totalorder %s12, 0
    %p156 = por %p154, %p155
    %p157 = scmp.ne.s32.totalorder %s149, %s151
    %p158 = scmp.eq.s32.totalorder %s17, 1
    %p159 = por %p157, %p158
    %p160 = scmp.ne.s32.totalorder %s151, %s152
    %p161 = scmp.eq.s32.totalorder %s17, 0
    %p162 = por %p160, %p161
    %p163 = scmp.ne.s32.totalorder %s151, %s152
    %p164 = scmp.eq.s32.totalorder %s18, 1
    %p165 = por %p163, %p164
    %p167 = scmp.ne.s32.totalorder %s152, %s166
    %p168 = scmp.eq.s32.totalorder %s18, 0
    %p169 = por %p167, %p168
    %s170 = ssub.s32 %s19, %s31
    %s171 = ssub.s32 %s20, %s27
    %s172 = sor.u32 %s170, %s171
    %p173 = scmp.eq.s32.totalorder %s172, 0
    %s175 = sadd.s32 %s174, 1
    %s176 = scalar_select %p173, %s174, %s175
    %p179 = pneg %p173
    %p180 = scmp.eq.s32.totalorder %s12, 1
    %p181 = por %p179, %p180
    %p182 = scmp.ne.s32.totalorder %s174, %s177
    %p183 = scmp.eq.s32.totalorder %s12, 0
    %p184 = por %p182, %p183
    %p185 = scmp.ne.s32.totalorder %s174, %s177
    %p186 = scmp.eq.s32.totalorder %s17, 1
    %p187 = por %p185, %p186
    %p188 = scmp.ne.s32.totalorder %s177, %s178
    %p189 = scmp.eq.s32.totalorder %s17, 0
    %p190 = por %p188, %p189
    %p191 = scmp.ne.s32.totalorder %s177, %s178
    %p192 = scmp.eq.s32.totalorder %s18, 1
    %p193 = por %p191, %p192
    %p195 = scmp.ne.s32.totalorder %s178, %s194
    %p196 = scmp.eq.s32.totalorder %s18, 0
    %p197 = por %p195, %p196
    %p198 = scmp.le.s32.totalorder 1, %s12
    %p199 = scmp.lt.s32.totalorder %s12, 3
    %p200 = pnand %p198, %p199
    %p201 = pneg %p200
    // Predicated region
    $region9: #{resnet_block_forward.3} parent=5 // pred_check
      _
    $region10: #{resnet_block_forward.3} parent=5 // pred_check_branch
      %203 = sbr.rel (%p200) target = $region12
    $region11: #{resnet_block_forward.3} parent=5 // pred_region
      %s204 = ssub.s32 %s12, 1
      // Predicated region
      $region13: #{resnet_block_forward.3} parent=11 // pred_check
        %p205 = pneg %p71
      $region14: #{resnet_block_forward.3} parent=11 // pred_check_branch
        %207 = sbr.rel (%p205) target = $region16
      $region15: #{resnet_block_forward.3} parent=11 // pred_region
        _
      $region16: #{resnet_block_forward.3} parent=11 // pred_fallthru
        _
      // Predicated region
      $region17: #{resnet_block_forward.3} parent=11 // pred_check
        %p208 = pneg %p92
      $region18: #{resnet_block_forward.3} parent=11 // pred_check_branch
        %210 = sbr.rel (%p208) target = $region20
      $region19: #{resnet_block_forward.3} parent=11 // pred_region
        _
      $region20: #{resnet_block_forward.3} parent=11 // pred_fallthru
        _
      // Predicated region
      $region21: #{resnet_block_forward.3} parent=11 // pred_check
        %p211 = pneg %p113
      $region22: #{resnet_block_forward.3} parent=11 // pred_check_branch
        %213 = sbr.rel (%p211) target = $region24
      $region23: #{resnet_block_forward.3} parent=11 // pred_region
        _
      $region24: #{resnet_block_forward.3} parent=11 // pred_fallthru
        _
      // Predicated region
      $region25: #{resnet_block_forward.3} parent=11 // pred_check
        %p214 = pneg %p162
      $region26: #{resnet_block_forward.3} parent=11 // pred_check_branch
        %216 = sbr.rel (%p214) target = $region28
      $region27: #{resnet_block_forward.3} parent=11 // pred_region
        _
      $region28: #{resnet_block_forward.3} parent=11 // pred_fallthru
        _
    $region12: #{resnet_block_forward.3} parent=5 // pred_fallthru
      _
    %p217 = scmp.lt.s32.totalorder %s12, 2
    // Predicated region
    $region29: #{resnet_block_forward.3} parent=5 // pred_check
      %p218 = pneg %p217
    $region30: #{resnet_block_forward.3} parent=5 // pred_check_branch
      %220 = sbr.rel (%p218) target = $region32
    $region31: #{resnet_block_forward.3} parent=5 // pred_region
      // Predicated region
      $region33: #{resnet_block_forward.3} parent=31 // pred_check
        %p221 = pneg %p44
      $region34: #{resnet_block_forward.3} parent=31 // pred_check_branch
        %223 = sbr.rel (%p221) target = $region36
      $region35: #{resnet_block_forward.3} parent=31 // pred_region
        %p224 = scmp.lt.s32.totalorder %s19, 1
        %s225 = scalar_select %p224, %s19, 1
        %s226 = smul.addr %s225, 13
        %s227 = smul.addr %s226, 4
        %s228 = scalar_lea.vmem %s0, %s227
      $region36: #{resnet_block_forward.3} parent=31 // pred_fallthru
        _
      // Predicated region
      $region37: #{resnet_block_forward.3} parent=31 // pred_check
        %p229 = pneg %p135
      $region38: #{resnet_block_forward.3} parent=31 // pred_check_branch
        %231 = sbr.rel (%p229) target = $region40
      $region39: #{resnet_block_forward.3} parent=31 // pred_region
        %s232 = smul.u32 10, %s20
        %p233 = scmp.lt.s32.totalorder %s19, 1
        %s234 = scalar_select %p233, %s19, 1
        %p235 = scmp.lt.s32.totalorder %s232, 9
        %s236 = scalar_select %p235, %s232, 9
        %s237 = smul.addr %s234, 10
        %s238 = sadd.s32 %s236, %s237
        %s239 = smul.addr %s238, 4
        %s240 = scalar_lea.vmem %s4, %s239
        %s241 = smul.u32 10, %s20
      $region40: #{resnet_block_forward.3} parent=31 // pred_fallthru
        _
    $region32: #{resnet_block_forward.3} parent=5 // pred_fallthru
      _
    %p242 = scmp.le.s32.totalorder 1, %s12
    %p243 = scmp.lt.s32.totalorder %s12, 3
    %p244 = pnand %p242, %p243
    %p245 = pneg %p244
    // Predicated region
    $region41: #{resnet_block_forward.3} parent=5 // pred_check
      _
    $region42: #{resnet_block_forward.3} parent=5 // pred_check_branch
      %247 = sbr.rel (%p244) target = $region44
    $region43: #{resnet_block_forward.3} parent=5 // pred_region
      %s248 = ssub.s32 %s12, 1
      %p249 = scmp.lt.s32.totalorder %s21, 1
      %s250 = scalar_select %p249, %s21, 1
      %s251 = smul.addr %s250, 13
      %s252 = smul.addr %s251, 4
      %s253 = scalar_lea.vmem %s0, %s252
      %p254 = pneg %p50
      %p255 = pneg %p47
      %p256 = pneg %p71
      %p257 = pneg %p68
      %p258 = pneg %p92
      %p259 = pneg %p89
      %p260 = pneg %p113
      %p261 = pneg %p110
      %s262 = smul.u32 10, %s22
      %p263 = scmp.lt.s32.totalorder %s21, 1
      %s264 = scalar_select %p263, %s21, 1
      %p265 = scmp.lt.s32.totalorder %s262, 9
      %s266 = scalar_select %p265, %s262, 9
      %s267 = smul.addr %s264, 10
      %s268 = sadd.s32 %s266, %s267
      %s269 = smul.addr %s268, 4
      %s270 = scalar_lea.vmem %s4, %s269
      %p271 = pneg %p141
      %p272 = pneg %p138
      %p273 = pneg %p162
      %p274 = pneg %p159
      %p275 = pneg %p190
      %p276 = pneg %p187
      %s277 = smul.u32 10, %s22
      %p278 = scmp.lt.s32.totalorder %s21, 1
      %s279 = scalar_select %p278, %s21, 1
      %p280 = scmp.lt.s32.totalorder %s277, 9
      %s281 = scalar_select %p280, %s277, 9
      %s282 = smul.addr %s279, 10
      %s283 = sadd.s32 %s281, %s282
      %s284 = smul.addr %s283, 8
      %s285 = scalar_lea.vmem %s6, %s284
      %p286 = scmp.lt.s32.totalorder %s21, 1
      %s287 = scalar_select %p286, %s21, 1
      %s288 = smul.addr %s287, 13
      %s289 = smul.addr %s288, 4
      %s290 = scalar_lea.vmem %s0, %s289
      %s291 = smul.u32 10, %s22
      %p292 = scmp.lt.s32.totalorder %s21, 1
      %s293 = scalar_select %p292, %s21, 1
      %p294 = scmp.lt.s32.totalorder %s291, 9
      %s295 = scalar_select %p294, %s291, 9
      %s296 = smul.addr %s293, 10
      %s297 = sadd.s32 %s295, %s296
      %s298 = smul.addr %s297, 4
      %s299 = scalar_lea.vmem %s4, %s298
      %s300 = smul.u32 10, %s22
      %s301 = smul.u32 10, %s22
      %p302 = scmp.lt.s32.totalorder %s21, 1
      %s303 = scalar_select %p302, %s21, 1
      %p304 = scmp.lt.s32.totalorder %s301, 9
      %s305 = scalar_select %p304, %s301, 9
      %s306 = smul.addr %s303, 10
      %s307 = sadd.s32 %s305, %s306
      %s308 = smul.addr %s307, 8
      %s309 = scalar_lea.vmem %s6, %s308
      %s310 = smul.u32 10, %s22
      %v312 = vld [vmem:[%s290] sm:$0xf]
      %v313 = vld [vmem:[%s290 + $0x4] sm:$0xf]
      %v314 = vld [vmem:[%s290 + $0x8] sm:$0xf]
      %v315 = vld [vmem:[%s290 + $0xc] sm:$0xf]
      %v316 = vld [vmem:[%s290 + $0x10] sm:$0xf]
      %v317 = vld [vmem:[%s290 + $0x14] sm:$0xf]
      %v318 = vld [vmem:[%s290 + $0x18] sm:$0xf]
      %v319 = vld [vmem:[%s290 + $0x1c] sm:$0xf]
      %v320 = vld [vmem:[%s290 + $0x20] sm:$0xf]
      %v321 = vld [vmem:[%s290 + $0x24] sm:$0xf]
      %v322 = vunpack.c.l.bf16 %v312
      %v323 = vunpack.c.l.bf16 %v313
      %v324 = vunpack.c.l.bf16 %v314
      %v325 = vunpack.c.l.bf16 %v315
      %v326 = vunpack.c.l.bf16 %v316
      %v327 = vunpack.c.l.bf16 %v317
      %v328 = vunpack.c.l.bf16 %v318
      %v329 = vunpack.c.l.bf16 %v319
      %v330 = vunpack.c.l.bf16 %v320
      %v331 = vunpack.c.l.bf16 %v321
      %v332 = vld [vmem:[%s290 + $0x28] sm:$0x1]
      %v333 = vunpack.c.l.bf16 %v332
      %v334 = vld [vmem:[%s290] sm:$0xe]
      %v335 = vunpack.c.l.bf16 %v334
      %v336 = vld [vmem:[%s290 + $0x4] sm:$0xe]
      %v337 = vld [vmem:[%s290 + $0x28] sm:$0xf]
      %v338 = vld [vmem:[%s290 + $0x2c] sm:$0x1]
      %v339 = vunpack.c.l.bf16 %v336
      %v340 = vunpack.c.l.bf16 %v337
      %v341 = vunpack.c.l.bf16 %v338
      %v342 = vld [vmem:[%s290 + $0x2c] sm:$0x3]
      %v343 = vunpack.c.l.bf16 %v342
      %v344 = vld [vmem:[%s290 + $0x4] sm:$0xc]
      %v345 = vunpack.c.l.bf16 %v344
      %v346 = vld [vmem:[%s290 + $0x8] sm:$0xc]
      %v347 = vld [vmem:[%s290 + $0x2c] sm:$0xf]
      %v348 = vld [vmem:[%s290 + $0x30] sm:$0x3]
      %v349 = vunpack.c.l.bf16 %v346
      %v350 = vunpack.c.l.bf16 %v347
      %v351 = vunpack.c.l.bf16 %v348
      %v352 = vld [vmem:[%s290 + $0x30] sm:$0x7]
      %v353 = vunpack.c.l.bf16 %v352
      %v354 = vld [vmem:[%s290 + $0x8] sm:$0x8]
      %v355 = vunpack.c.l.bf16 %v354
      %vm367 = vcmask 1046528
      %v368 = vrot.slane %v322, 1
      %v369 = vrot.slane %v323, 1
      %v370 = vsel %vm367, %v368, %v369
      %v371 = vrot.slane %v324, 1
      %v372 = vsel %vm367, %v369, %v371
      %v373 = vrot.slane %v325, 1
      %v374 = vsel %vm367, %v371, %v373
      %v375 = vrot.slane %v326, 1
      %v376 = vsel %vm367, %v373, %v375
      %v377 = vrot.slane %v327, 1
      %v378 = vsel %vm367, %v375, %v377
      %v379 = vrot.slane %v328, 1
      %v380 = vsel %vm367, %v377, %v379
      %v381 = vrot.slane %v329, 1
      %v382 = vsel %vm367, %v379, %v381
      %v383 = vrot.slane %v330, 1
      %v384 = vsel %vm367, %v381, %v383
      %v385 = vrot.slane %v331, 1
      %v386 = vsel %vm367, %v383, %v385
      %v387 = vrot.slane %v333, 1
      %v388 = vsel %vm367, %v385, %v387
      %389 = vrot.lane.b32.xlu0 %v370, 8
      %v390 = vpop.permute.xlu0 %389
      %391 = vrot.lane.b32.xlu0 %v372, 8
      %v392 = vpop.permute.xlu0 %391
      %393 = vrot.lane.b32.xlu0 %v374, 8
      %v394 = vpop.permute.xlu0 %393
      %395 = vrot.lane.b32.xlu0 %v376, 8
      %v396 = vpop.permute.xlu0 %395
      %397 = vrot.lane.b32.xlu0 %v378, 8
      %v398 = vpop.permute.xlu0 %397
      %399 = vrot.lane.b32.xlu0 %v380, 8
      %v400 = vpop.permute.xlu0 %399
      %401 = vrot.lane.b32.xlu0 %v382, 8
      %v402 = vpop.permute.xlu0 %401
      %403 = vrot.lane.b32.xlu0 %v384, 8
      %v404 = vpop.permute.xlu0 %403
      %405 = vrot.lane.b32.xlu0 %v386, 8
      %v406 = vpop.permute.xlu0 %405
      %407 = vrot.lane.b32.xlu0 %v388, 8
      %v408 = vpop.permute.xlu0 %407
      %vm420 = vcmask 1045504
      %v421 = vrot.slane %v335, 2
      %v422 = vrot.slane %v323, 2
      %v423 = vsel %vm420, %v421, %v422
      %v424 = vrot.slane %v324, 2
      %v425 = vsel %vm420, %v422, %v424
      %v426 = vrot.slane %v325, 2
      %v427 = vsel %vm420, %v424, %v426
      %v428 = vrot.slane %v326, 2
      %v429 = vsel %vm420, %v426, %v428
      %v430 = vrot.slane %v327, 2
      %v431 = vsel %vm420, %v428, %v430
      %v432 = vrot.slane %v328, 2
      %v433 = vsel %vm420, %v430, %v432
      %v434 = vrot.slane %v329, 2
      %v435 = vsel %vm420, %v432, %v434
      %v436 = vrot.slane %v330, 2
      %v437 = vsel %vm420, %v434, %v436
      %v438 = vrot.slane %v331, 2
      %v439 = vsel %vm420, %v436, %v438
      %v440 = vrot.slane %v333, 2
      %v441 = vsel %vm420, %v438, %v440
      %442 = vrot.lane.b32.xlu0 %v423, 16
      %v443 = vpop.permute.xlu0 %442
      %444 = vrot.lane.b32.xlu0 %v425, 16
      %v445 = vpop.permute.xlu0 %444
      %446 = vrot.lane.b32.xlu0 %v427, 16
      %v447 = vpop.permute.xlu0 %446
      %448 = vrot.lane.b32.xlu0 %v429, 16
      %v449 = vpop.permute.xlu0 %448
      %450 = vrot.lane.b32.xlu0 %v431, 16
      %v451 = vpop.permute.xlu0 %450
      %452 = vrot.lane.b32.xlu0 %v433, 16
      %v453 = vpop.permute.xlu0 %452
      %454 = vrot.lane.b32.xlu0 %v435, 16
      %v455 = vpop.permute.xlu0 %454
      %456 = vrot.lane.b32.xlu0 %v437, 16
      %v457 = vpop.permute.xlu0 %456
      %458 = vrot.lane.b32.xlu0 %v439, 16
      %v459 = vpop.permute.xlu0 %458
      %460 = vrot.lane.b32.xlu0 %v441, 16
      %v461 = vpop.permute.xlu0 %460
      %v475 = vrot.slane %v339, 2
      %v476 = vsel %vm420, %v475, %v424
      %v477 = vrot.slane %v340, 2
      %v478 = vsel %vm420, %v438, %v477
      %v479 = vrot.slane %v341, 2
      %v480 = vsel %vm420, %v477, %v479
      %481 = vrot.lane.b32.xlu0 %v476, 24
      %v482 = vpop.permute.xlu0 %481
      %483 = vrot.lane.b32.xlu0 %v427, 24
      %v484 = vpop.permute.xlu0 %483
      %485 = vrot.lane.b32.xlu0 %v429, 24
      %v486 = vpop.permute.xlu0 %485
      %487 = vrot.lane.b32.xlu0 %v431, 24
      %v488 = vpop.permute.xlu0 %487
      %489 = vrot.lane.b32.xlu0 %v433, 24
      %v490 = vpop.permute.xlu0 %489
      %491 = vrot.lane.b32.xlu0 %v435, 24
      %v492 = vpop.permute.xlu0 %491
      %493 = vrot.lane.b32.xlu0 %v437, 24
      %v494 = vpop.permute.xlu0 %493
      %495 = vrot.lane.b32.xlu0 %v439, 24
      %v496 = vpop.permute.xlu0 %495
      %497 = vrot.lane.b32.xlu0 %v478, 24
      %v498 = vpop.permute.xlu0 %497
      %499 = vrot.lane.b32.xlu0 %v480, 24
      %v500 = vpop.permute.xlu0 %499
      %vm512 = vcmask 1044480
      %v513 = vrot.slane %v339, 3
      %v514 = vrot.slane %v324, 3
      %v515 = vsel %vm512, %v513, %v514
      %v516 = vrot.slane %v325, 3
      %v517 = vsel %vm512, %v514, %v516
      %v518 = vrot.slane %v326, 3
      %v519 = vsel %vm512, %v516, %v518
      %v520 = vrot.slane %v327, 3
      %v521 = vsel %vm512, %v518, %v520
      %v522 = vrot.slane %v328, 3
      %v523 = vsel %vm512, %v520, %v522
      %v524 = vrot.slane %v329, 3
      %v525 = vsel %vm512, %v522, %v524
      %v526 = vrot.slane %v330, 3
      %v527 = vsel %vm512, %v524, %v526
      %v528 = vrot.slane %v331, 3
      %v529 = vsel %vm512, %v526, %v528
      %v530 = vrot.slane %v340, 3
      %v531 = vsel %vm512, %v528, %v530
      %v532 = vrot.slane %v343, 3
      %v533 = vsel %vm512, %v530, %v532
      %534 = vrot.lane.b32.xlu0 %v515, 32
      %v535 = vpop.permute.xlu0 %534
      %536 = vrot.lane.b32.xlu0 %v517, 32
      %v537 = vpop.permute.xlu0 %536
      %538 = vrot.lane.b32.xlu0 %v519, 32
      %v539 = vpop.permute.xlu0 %538
      %540 = vrot.lane.b32.xlu0 %v521, 32
      %v541 = vpop.permute.xlu0 %540
      %542 = vrot.lane.b32.xlu0 %v523, 32
      %v543 = vpop.permute.xlu0 %542
      %544 = vrot.lane.b32.xlu0 %v525, 32
      %v545 = vpop.permute.xlu0 %544
      %546 = vrot.lane.b32.xlu0 %v527, 32
      %v547 = vpop.permute.xlu0 %546
      %548 = vrot.lane.b32.xlu0 %v529, 32
      %v549 = vpop.permute.xlu0 %548
      %550 = vrot.lane.b32.xlu0 %v531, 32
      %v551 = vpop.permute.xlu0 %550
      %552 = vrot.lane.b32.xlu0 %v533, 32
      %v553 = vpop.permute.xlu0 %552
      %vm565 = vcmask 1043456
      %v566 = vrot.slane %v345, 4
      %v567 = vrot.slane %v324, 4
      %v568 = vsel %vm565, %v566, %v567
      %v569 = vrot.slane %v325, 4
      %v570 = vsel %vm565, %v567, %v569
      %v571 = vrot.slane %v326, 4
      %v572 = vsel %vm565, %v569, %v571
      %v573 = vrot.slane %v327, 4
      %v574 = vsel %vm565, %v571, %v573
      %v575 = vrot.slane %v328, 4
      %v576 = vsel %vm565, %v573, %v575
      %v577 = vrot.slane %v329, 4
      %v578 = vsel %vm565, %v575, %v577
      %v579 = vrot.slane %v330, 4
      %v580 = vsel %vm565, %v577, %v579
      %v581 = vrot.slane %v331, 4
      %v582 = vsel %vm565, %v579, %v581
      %v583 = vrot.slane %v340, 4
      %v584 = vsel %vm565, %v581, %v583
      %v585 = vrot.slane %v343, 4
      %v586 = vsel %vm565, %v583, %v585
      %587 = vrot.lane.b32.xlu0 %v568, 40
      %v588 = vpop.permute.xlu0 %587
      %589 = vrot.lane.b32.xlu0 %v570, 40
      %v590 = vpop.permute.xlu0 %589
      %591 = vrot.lane.b32.xlu0 %v572, 40
      %v592 = vpop.permute.xlu0 %591
      %593 = vrot.lane.b32.xlu0 %v574, 40
      %v594 = vpop.permute.xlu0 %593
      %595 = vrot.lane.b32.xlu0 %v576, 40
      %v596 = vpop.permute.xlu0 %595
      %597 = vrot.lane.b32.xlu0 %v578, 40
      %v598 = vpop.permute.xlu0 %597
      %599 = vrot.lane.b32.xlu0 %v580, 40
      %v600 = vpop.permute.xlu0 %599
      %601 = vrot.lane.b32.xlu0 %v582, 40
      %v602 = vpop.permute.xlu0 %601
      %603 = vrot.lane.b32.xlu0 %v584, 40
      %v604 = vpop.permute.xlu0 %603
      %605 = vrot.lane.b32.xlu0 %v586, 40
      %v606 = vpop.permute.xlu0 %605
      %v620 = vrot.slane %v349, 4
      %v621 = vsel %vm565, %v620, %v569
      %v622 = vrot.slane %v350, 4
      %v623 = vsel %vm565, %v583, %v622
      %v624 = vrot.slane %v351, 4
      %v625 = vsel %vm565, %v622, %v624
      %626 = vrot.lane.b32.xlu0 %v621, 48
      %v627 = vpop.permute.xlu0 %626
      %628 = vrot.lane.b32.xlu0 %v572, 48
      %v629 = vpop.permute.xlu0 %628
      %630 = vrot.lane.b32.xlu0 %v574, 48
      %v631 = vpop.permute.xlu0 %630
      %632 = vrot.lane.b32.xlu0 %v576, 48
      %v633 = vpop.permute.xlu0 %632
      %634 = vrot.lane.b32.xlu0 %v578, 48
      %v635 = vpop.permute.xlu0 %634
      %636 = vrot.lane.b32.xlu0 %v580, 48
      %v637 = vpop.permute.xlu0 %636
      %638 = vrot.lane.b32.xlu0 %v582, 48
      %v639 = vpop.permute.xlu0 %638
      %640 = vrot.lane.b32.xlu0 %v584, 48
      %v641 = vpop.permute.xlu0 %640
      %642 = vrot.lane.b32.xlu0 %v623, 48
      %v643 = vpop.permute.xlu0 %642
      %644 = vrot.lane.b32.xlu0 %v625, 48
      %v645 = vpop.permute.xlu0 %644
      %vm657 = vcmask 1042432
      %v658 = vrot.slane %v349, 5
      %v659 = vrot.slane %v325, 5
      %v660 = vsel %vm657, %v658, %v659
      %v661 = vrot.slane %v326, 5
      %v662 = vsel %vm657, %v659, %v661
      %v663 = vrot.slane %v327, 5
      %v664 = vsel %vm657, %v661, %v663
      %v665 = vrot.slane %v328, 5
      %v666 = vsel %vm657, %v663, %v665
      %v667 = vrot.slane %v329, 5
      %v668 = vsel %vm657, %v665, %v667
      %v669 = vrot.slane %v330, 5
      %v670 = vsel %vm657, %v667, %v669
      %v671 = vrot.slane %v331, 5
      %v672 = vsel %vm657, %v669, %v671
      %v673 = vrot.slane %v340, 5
      %v674 = vsel %vm657, %v671, %v673
      %v675 = vrot.slane %v350, 5
      %v676 = vsel %vm657, %v673, %v675
      %v677 = vrot.slane %v353, 5
      %v678 = vsel %vm657, %v675, %v677
      %679 = vrot.lane.b32.xlu0 %v660, 56
      %v680 = vpop.permute.xlu0 %679
      %681 = vrot.lane.b32.xlu0 %v662, 56
      %v682 = vpop.permute.xlu0 %681
      %683 = vrot.lane.b32.xlu0 %v664, 56
      %v684 = vpop.permute.xlu0 %683
      %685 = vrot.lane.b32.xlu0 %v666, 56
      %v686 = vpop.permute.xlu0 %685
      %687 = vrot.lane.b32.xlu0 %v668, 56
      %v688 = vpop.permute.xlu0 %687
      %689 = vrot.lane.b32.xlu0 %v670, 56
      %v690 = vpop.permute.xlu0 %689
      %691 = vrot.lane.b32.xlu0 %v672, 56
      %v692 = vpop.permute.xlu0 %691
      %693 = vrot.lane.b32.xlu0 %v674, 56
      %v694 = vpop.permute.xlu0 %693
      %695 = vrot.lane.b32.xlu0 %v676, 56
      %v696 = vpop.permute.xlu0 %695
      %697 = vrot.lane.b32.xlu0 %v678, 56
      %v698 = vpop.permute.xlu0 %697
      %vm710 = vcmask 1041408
      %v711 = vrot.slane %v355, 6
      %v712 = vrot.slane %v325, 6
      %v713 = vsel %vm710, %v711, %v712
      %v714 = vrot.slane %v326, 6
      %v715 = vsel %vm710, %v712, %v714
      %v716 = vrot.slane %v327, 6
      %v717 = vsel %vm710, %v714, %v716
      %v718 = vrot.slane %v328, 6
      %v719 = vsel %vm710, %v716, %v718
      %v720 = vrot.slane %v329, 6
      %v721 = vsel %vm710, %v718, %v720
      %v722 = vrot.slane %v330, 6
      %v723 = vsel %vm710, %v720, %v722
      %v724 = vrot.slane %v331, 6
      %v725 = vsel %vm710, %v722, %v724
      %v726 = vrot.slane %v340, 6
      %v727 = vsel %vm710, %v724, %v726
      %v728 = vrot.slane %v350, 6
      %v729 = vsel %vm710, %v726, %v728
      %v730 = vrot.slane %v353, 6
      %v731 = vsel %vm710, %v728, %v730
      %732 = vrot.lane.b32.xlu0 %v713, 64
      %v733 = vpop.permute.xlu0 %732
      %734 = vrot.lane.b32.xlu0 %v715, 64
      %v735 = vpop.permute.xlu0 %734
      %736 = vrot.lane.b32.xlu0 %v717, 64
      %v737 = vpop.permute.xlu0 %736
      %738 = vrot.lane.b32.xlu0 %v719, 64
      %v739 = vpop.permute.xlu0 %738
      %740 = vrot.lane.b32.xlu0 %v721, 64
      %v741 = vpop.permute.xlu0 %740
      %742 = vrot.lane.b32.xlu0 %v723, 64
      %v743 = vpop.permute.xlu0 %742
      %744 = vrot.lane.b32.xlu0 %v725, 64
      %v745 = vpop.permute.xlu0 %744
      %746 = vrot.lane.b32.xlu0 %v727, 64
      %v747 = vpop.permute.xlu0 %746
      %748 = vrot.lane.b32.xlu0 %v729, 64
      %v749 = vpop.permute.xlu0 %748
      %750 = vrot.lane.b32.xlu0 %v731, 64
      %v751 = vpop.permute.xlu0 %750
      %vm762 = vcmask 64512
      %v763 = vsel %vm762, %v322, %v390
      %v764 = vsel %vm762, %v323, %v392
      %v765 = vsel %vm762, %v324, %v394
      %v766 = vsel %vm762, %v325, %v396
      %v767 = vsel %vm762, %v326, %v398
      %v768 = vsel %vm762, %v327, %v400
      %v769 = vsel %vm762, %v328, %v402
      %v770 = vsel %vm762, %v329, %v404
      %v771 = vsel %vm762, %v330, %v406
      %v772 = vsel %vm762, %v331, %v408
      %vm773 = vcmask 130048
      %v774 = vsel %vm773, %v763, %v443
      %v775 = vsel %vm773, %v764, %v445
      %v776 = vsel %vm773, %v765, %v447
      %v777 = vsel %vm773, %v766, %v449
      %v778 = vsel %vm773, %v767, %v451
      %v779 = vsel %vm773, %v768, %v453
      %v780 = vsel %vm773, %v769, %v455
      %v781 = vsel %vm773, %v770, %v457
      %v782 = vsel %vm773, %v771, %v459
      %v783 = vsel %vm773, %v772, %v461
      %vm784 = vcmask 195584
      %v785 = vsel %vm784, %v774, %v482
      %v786 = vsel %vm784, %v775, %v484
      %v787 = vsel %vm784, %v776, %v486
      %v788 = vsel %vm784, %v777, %v488
      %v789 = vsel %vm784, %v778, %v490
      %v790 = vsel %vm784, %v779, %v492
      %v791 = vsel %vm784, %v780, %v494
      %v792 = vsel %vm784, %v781, %v496
      %v793 = vsel %vm784, %v782, %v498
      %v794 = vsel %vm784, %v783, %v500
      %vm795 = vcmask 261120
      %v796 = vsel %vm795, %v785, %v535
      %v797 = vsel %vm795, %v786, %v537
      %v798 = vsel %vm795, %v787, %v539
      %v799 = vsel %vm795, %v788, %v541
      %v800 = vsel %vm795, %v789, %v543
      %v801 = vsel %vm795, %v790, %v545
      %v802 = vsel %vm795, %v791, %v547
      %v803 = vsel %vm795, %v792, %v549
      %v804 = vsel %vm795, %v793, %v551
      %v805 = vsel %vm795, %v794, %v553
      %vm806 = vcmask 326656
      %v807 = vsel %vm806, %v796, %v588
      %v808 = vsel %vm806, %v797, %v590
      %v809 = vsel %vm806, %v798, %v592
      %v810 = vsel %vm806, %v799, %v594
      %v811 = vsel %vm806, %v800, %v596
      %v812 = vsel %vm806, %v801, %v598
      %v813 = vsel %vm806, %v802, %v600
      %v814 = vsel %vm806, %v803, %v602
      %v815 = vsel %vm806, %v804, %v604
      %v816 = vsel %vm806, %v805, %v606
      %vm817 = vcmask 392192
      %v818 = vsel %vm817, %v807, %v627
      %v819 = vsel %vm817, %v808, %v629
      %v820 = vsel %vm817, %v809, %v631
      %v821 = vsel %vm817, %v810, %v633
      %v822 = vsel %vm817, %v811, %v635
      %v823 = vsel %vm817, %v812, %v637
      %v824 = vsel %vm817, %v813, %v639
      %v825 = vsel %vm817, %v814, %v641
      %v826 = vsel %vm817, %v815, %v643
      %v827 = vsel %vm817, %v816, %v645
      %vm828 = vcmask 457728
      %v829 = vsel %vm828, %v818, %v680
      %v830 = vsel %vm828, %v819, %v682
      %v831 = vsel %vm828, %v820, %v684
      %v832 = vsel %vm828, %v821, %v686
      %v833 = vsel %vm828, %v822, %v688
      %v834 = vsel %vm828, %v823, %v690
      %v835 = vsel %vm828, %v824, %v692
      %v836 = vsel %vm828, %v825, %v694
      %v837 = vsel %vm828, %v826, %v696
      %v838 = vsel %vm828, %v827, %v698
      %vm839 = vcmask 523264
      %v840 = vsel %vm839, %v829, %v733
      %v841 = vsel %vm839, %v830, %v735
      %v842 = vsel %vm839, %v831, %v737
      %v843 = vsel %vm839, %v832, %v739
      %v844 = vsel %vm839, %v833, %v741
      %v845 = vsel %vm839, %v834, %v743
      %v846 = vsel %vm839, %v835, %v745
      %v847 = vsel %vm839, %v836, %v747
      %v848 = vsel %vm839, %v837, %v749
      %v849 = vsel %vm839, %v838, %v751
      %v850 = vpack.c.bf16 %v841, %v840
      %v851 = vpack.c.bf16 %v843, %v842
      %v852 = vpack.c.bf16 %v845, %v844
      %v853 = vpack.c.bf16 %v847, %v846
      %v854 = vpack.c.bf16 %v849, %v848
      %v855 = vld [vmem:[%s1] sm:$0xf]
      %v856 = vld [vmem:[%s1 + $0x4] sm:$0xf]
      %v857 = vld [vmem:[%s1 + $0x8] sm:$0xf]
      %v858 = vld [vmem:[%s1 + $0xc] sm:$0xf]
      %v859 = vld [vmem:[%s1 + $0x10] sm:$0xf]
      %v860 = vld [vmem:[%s1 + $0x14] sm:$0xf]
      %v861 = vld [vmem:[%s1 + $0x18] sm:$0xf]
      %v862 = vld [vmem:[%s1 + $0x1c] sm:$0xf]
      %v863 = vld [vmem:[%s1 + $0x20] sm:$0xf]
      %v873 = vunpack.c.l.b16 %v855
      %v874 = vunpack.c.l.b16 %v856
      %v875 = vunpack.c.l.b16 %v857
      %v876 = vunpack.c.l.b16 %v858
      %v877 = vunpack.c.l.b16 %v859
      %v878 = vunpack.c.l.b16 %v860
      %v879 = vunpack.c.l.b16 %v861
      %v880 = vunpack.c.l.b16 %v862
      %v881 = vunpack.c.l.b16 %v863
      %v882 = vpack.c.b16 %v874, %v873
      %v883 = vpack.c.b16 %v876, %v875
      %v884 = vpack.c.b16 %v878, %v877
      %v885 = vpack.c.b16 %v880, %v879
      %v886 = vpack.c.b16 %v881, %v881
      %vm891 = vcmask 588800
      %v893 = vsel %vm891, %v850, 0
      %v896 = vsel %vm891, %v851, 0
      %v899 = vsel %vm891, %v852, 0
      %v902 = vsel %vm891, %v853, 0
      %v905 = vsel %vm891, %v854, 0
      %v908 = vsel %vm565, %v886, 0
      %910 = vmatprep.subr.bf16.mxu0 0
      %911 = vmatpush1.bf16.msra.mxu0 0
      %912 = vmatprep.subr.bf16.mxu0 0
      %913 = vmatpush1.bf16.msra.mxu0 0
      %914 = vmatprep.subr.bf16.mxu0 0
      %915 = vmatpush1.bf16.msra.mxu0 0
      %916 = vmatprep.subr.bf16.mxu0 0
      %917 = vmatpush1.bf16.msra.mxu0 %v908
      %918 = vmatprep.subr.bf16.mxu0 0
      %919 = vmatpush1.bf16.msra.mxu0 %v885
      %920 = vmatprep.subr.bf16.mxu0 0
      %921 = vmatpush1.bf16.msra.mxu0 %v884
      %922 = vmatprep.subr.bf16.mxu0 0
      %923 = vmatpush1.bf16.msra.mxu0 %v883
      %924 = vmatprep.subr.bf16.mxu0 0
      %925 = vmatpush1.bf16.msra.mxu0 %v882
      %926 = vmatprep.subr.bf16.mxu0 0
      %927 = vmatpush2.bf16.msra.mxu0 0
      %928 = vmatprep.subr.bf16.mxu0 0
      %929 = vmatpush2.bf16.msra.mxu0 0
      %930 = vmatprep.subr.bf16.mxu0 0
      %931 = vmatpush2.bf16.msra.mxu0 0
      %932 = vmatprep.subr.bf16.mxu0 0
      %933 = vmatpush2.bf16.msra.mxu0 0
      %934 = vmatprep.subr.bf16.mxu0 0
      %935 = vmatpush2.bf16.msra.mxu0 0
      %936 = vmatprep.subr.bf16.mxu0 0
      %937 = vmatpush2.bf16.msra.mxu0 0
      %938 = vmatprep.subr.bf16.mxu0 0
      %939 = vmatpush2.bf16.msra.mxu0 0
      %940 = vmatprep.subr.bf16.mxu0 0
      %941 = vmatpush2.bf16.msra.mxu0 0
      %942 = vmatprep.mubr.bf16.mxu0 0
      %943 = vmatmul.mubr.bf16.gmra.mxu0 %v893
      %v944 = vpop.f32.mrf.mxu0
      %v945 = vadd.f32 0.0, %v944
      %v946 = vpop.f32.mrf.mxu0
      %v947 = vpop.f32.mrf.mxu0
      %v948 = vadd.f32 0.0, %v947
      %v949 = vpop.f32.mrf.mxu0
      %950 = vmatprep.mubr.bf16.mxu0 0
      %951 = vmatmul.mubr.bf16.gmra.mxu0 %v896
      %v952 = vpop.f32.mrf.mxu0
      %v953 = vadd.f32 0.0, %v952
      %v954 = vpop.f32.mrf.mxu0
      %v955 = vpop.f32.mrf.mxu0
      %v956 = vadd.f32 0.0, %v955
      %v957 = vpop.f32.mrf.mxu0
      %958 = vmatprep.mubr.bf16.mxu0 0
      %959 = vmatmul.mubr.bf16.gmra.mxu0 %v899
      %v960 = vpop.f32.mrf.mxu0
      %v961 = vadd.f32 0.0, %v960
      %v962 = vpop.f32.mrf.mxu0
      %v963 = vpop.f32.mrf.mxu0
      %v964 = vadd.f32 0.0, %v963
      %v965 = vpop.f32.mrf.mxu0
      %966 = vmatprep.mubr.bf16.mxu0 0
      %967 = vmatmul.mubr.bf16.gmra.mxu0 %v902
      %v968 = vpop.f32.mrf.mxu0
      %v969 = vadd.f32 0.0, %v968
      %v970 = vpop.f32.mrf.mxu0
      %v971 = vpop.f32.mrf.mxu0
      %v972 = vadd.f32 0.0, %v971
      %v973 = vpop.f32.mrf.mxu0
      %974 = vmatprep.mubr.bf16.mxu0 0
      %975 = vmatmul.mubr.bf16.gmra.mxu0 %v905
      %v976 = vpop.f32.mrf.mxu0
      %v977 = vadd.f32 0.0, %v976
      %v978 = vpop.f32.mrf.mxu0
      %v979 = vpop.f32.mrf.mxu0
      %v980 = vadd.f32 0.0, %v979
      %v981 = vpop.f32.mrf.mxu0
      %982 = vdwg.mxu0
      %v983 = vld [vmem:[%s2] sm:$0x1]
      %v985 = vlaneseq
      %v986 = vshrl.u32 %v985, 7
      %v987 = vsub.s32 0, %v986
      %v988 = vrot.slane %v983, %v987
      %v990 = vmul.f32 %v945, %v988
      %v991 = vmul.f32 %v948, %v988
      %v992 = vmul.f32 %v953, %v988
      %v993 = vmul.f32 %v956, %v988
      %v994 = vmul.f32 %v961, %v988
      %v995 = vmul.f32 %v964, %v988
      %v996 = vmul.f32 %v969, %v988
      %v997 = vmul.f32 %v972, %v988
      %v998 = vmul.f32 %v977, %v988
      %v999 = vmul.f32 %v980, %v988
      %v1000 = vld [vmem:[%s3] sm:$0x1]
      %v1002 = vlaneseq
      %v1003 = vshrl.u32 %v1002, 7
      %v1004 = vsub.s32 0, %v1003
      %v1005 = vrot.slane %v1000, %v1004
      %v1007 = vadd.f32 %v990, %v1005
      %v1008 = vadd.f32 %v991, %v1005
      %v1009 = vadd.f32 %v992, %v1005
      %v1010 = vadd.f32 %v993, %v1005
      %v1011 = vadd.f32 %v994, %v1005
      %v1012 = vadd.f32 %v995, %v1005
      %v1013 = vadd.f32 %v996, %v1005
      %v1014 = vadd.f32 %v997, %v1005
      %v1015 = vadd.f32 %v998, %v1005
      %v1016 = vadd.f32 %v999, %v1005
      %v1017 = vld [vmem:[%s299] sm:$0xf]
      %v1018 = vld [vmem:[%s299 + $0x4] sm:$0xf]
      %v1019 = vld [vmem:[%s299 + $0x8] sm:$0xf]
      %v1020 = vld [vmem:[%s299 + $0xc] sm:$0xf]
      %v1021 = vld [vmem:[%s299 + $0x10] sm:$0xf]
      %v1022 = vld [vmem:[%s299 + $0x14] sm:$0xf]
      %v1023 = vld [vmem:[%s299 + $0x18] sm:$0xf]
      %v1024 = vld [vmem:[%s299 + $0x1c] sm:$0xf]
      %v1025 = vld [vmem:[%s299 + $0x20] sm:$0xf]
      %v1026 = vld [vmem:[%s299 + $0x24] sm:$0xf]
      %v1027 = vld [vmem:[%s5] sm:$0x3]
      %v1038 = vunpack.c.l.b16 %v1017
      %v1039 = vunpack.c.l.b16 %v1018
      %v1040 = vunpack.c.l.b16 %v1019
      %v1041 = vunpack.c.l.b16 %v1020
      %v1042 = vunpack.c.l.b16 %v1021
      %v1043 = vunpack.c.l.b16 %v1022
      %v1044 = vunpack.c.l.b16 %v1023
      %v1045 = vunpack.c.l.b16 %v1024
      %v1046 = vunpack.c.l.b16 %v1025
      %v1047 = vunpack.c.l.b16 %v1026
      %v1048 = vpack.c.b16 %v1039, %v1038
      %v1049 = vpack.c.b16 %v1041, %v1040
      %v1050 = vpack.c.b16 %v1043, %v1042
      %v1051 = vpack.c.b16 %v1045, %v1044
      %v1052 = vpack.c.b16 %v1047, %v1046
      %vm1053 = vcmask 31744
      %v1055 = vsel %vm1053, %v1048, 0
      %v1058 = vsel %vm1053, %v1049, 0
      %v1061 = vsel %vm1053, %v1050, 0
      %v1064 = vsel %vm1053, %v1051, 0
      %v1067 = vsel %vm1053, %v1052, 0
      %v1070 = vsel %vm710, %v1027, 0
      %1072 = vmatprep.subr.bf16.mxu0 0
      %1073 = vmatpush1.bf16.msra.mxu0 0
      %1074 = vmatprep.subr.bf16.mxu0 0
      %1075 = vmatpush1.bf16.msra.mxu0 0
      %1076 = vmatprep.subr.bf16.mxu0 0
      %1077 = vmatpush1.bf16.msra.mxu0 0
      %1078 = vmatprep.subr.bf16.mxu0 0
      %1079 = vmatpush1.bf16.msra.mxu0 0
      %1080 = vmatprep.subr.bf16.mxu0 0
      %1081 = vmatpush1.bf16.msra.mxu0 0
      %1082 = vmatprep.subr.bf16.mxu0 0
      %1083 = vmatpush1.bf16.msra.mxu0 0
      %1084 = vmatprep.subr.bf16.mxu0 0
      %1085 = vmatpush1.bf16.msra.mxu0 0
      %1086 = vmatprep.subr.bf16.mxu0 0
      %1087 = vmatpush1.bf16.msra.mxu0 %v1070
      %1088 = vmatprep.subr.bf16.mxu0 0
      %1089 = vmatpush2.bf16.msra.mxu0 0
      %1090 = vmatprep.subr.bf16.mxu0 0
      %1091 = vmatpush2.bf16.msra.mxu0 0
      %1092 = vmatprep.subr.bf16.mxu0 0
      %1093 = vmatpush2.bf16.msra.mxu0 0
      %1094 = vmatprep.subr.bf16.mxu0 0
      %1095 = vmatpush2.bf16.msra.mxu0 0
      %1096 = vmatprep.subr.bf16.mxu0 0
      %1097 = vmatpush2.bf16.msra.mxu0 0
      %1098 = vmatprep.subr.bf16.mxu0 0
      %1099 = vmatpush2.bf16.msra.mxu0 0
      %1100 = vmatprep.subr.bf16.mxu0 0
      %1101 = vmatpush2.bf16.msra.mxu0 0
      %1102 = vmatprep.subr.bf16.mxu0 0
      %1103 = vmatpush2.bf16.msra.mxu0 0
      %1104 = vmatprep.mubr.bf16.mxu0 0
      %1105 = vmatmul.mubr.bf16.gmra.mxu0 %v1055
      %v1106 = vpop.f32.mrf.mxu0
      %v1107 = vadd.f32 0.0, %v1106
      %v1108 = vpop.f32.mrf.mxu0
      %v1109 = vpop.f32.mrf.mxu0
      %v1110 = vadd.f32 0.0, %v1109
      %v1111 = vpop.f32.mrf.mxu0
      %1112 = vmatprep.mubr.bf16.mxu0 0
      %1113 = vmatmul.mubr.bf16.gmra.mxu0 %v1058
      %v1114 = vpop.f32.mrf.mxu0
      %v1115 = vadd.f32 0.0, %v1114
      %v1116 = vpop.f32.mrf.mxu0
      %v1117 = vpop.f32.mrf.mxu0
      %v1118 = vadd.f32 0.0, %v1117
      %v1119 = vpop.f32.mrf.mxu0
      %1120 = vmatprep.mubr.bf16.mxu0 0
      %1121 = vmatmul.mubr.bf16.gmra.mxu0 %v1061
      %v1122 = vpop.f32.mrf.mxu0
      %v1123 = vadd.f32 0.0, %v1122
      %v1124 = vpop.f32.mrf.mxu0
      %v1125 = vpop.f32.mrf.mxu0
      %v1126 = vadd.f32 0.0, %v1125
      %v1127 = vpop.f32.mrf.mxu0
      %1128 = vmatprep.mubr.bf16.mxu0 0
      %1129 = vmatmul.mubr.bf16.gmra.mxu0 %v1064
      %v1130 = vpop.f32.mrf.mxu0
      %v1131 = vadd.f32 0.0, %v1130
      %v1132 = vpop.f32.mrf.mxu0
      %v1133 = vpop.f32.mrf.mxu0
      %v1134 = vadd.f32 0.0, %v1133
      %v1135 = vpop.f32.mrf.mxu0
      %1136 = vmatprep.mubr.bf16.mxu0 0
      %1137 = vmatmul.mubr.bf16.gmra.mxu0 %v1067
      %v1138 = vpop.f32.mrf.mxu0
      %v1139 = vadd.f32 0.0, %v1138
      %v1140 = vpop.f32.mrf.mxu0
      %v1141 = vpop.f32.mrf.mxu0
      %v1142 = vadd.f32 0.0, %v1141
      %v1143 = vpop.f32.mrf.mxu0
      %1144 = vdwg.mxu0
      %v1145 = vadd.f32 %v1007, %v1107
      %v1146 = vadd.f32 %v1008, %v1110
      %v1147 = vadd.f32 %v1009, %v1115
      %v1148 = vadd.f32 %v1010, %v1118
      %v1149 = vadd.f32 %v1011, %v1123
      %v1150 = vadd.f32 %v1012, %v1126
      %v1151 = vadd.f32 %v1013, %v1131
      %v1152 = vadd.f32 %v1014, %v1134
      %v1153 = vadd.f32 %v1015, %v1139
      %v1154 = vadd.f32 %v1016, %v1142
      %v1155 = vmax.f32 %v1145, 0.0
      %v1156 = vmax.f32 %v1146, 0.0
      %v1157 = vmax.f32 %v1147, 0.0
      %v1158 = vmax.f32 %v1148, 0.0
      %v1159 = vmax.f32 %v1149, 0.0
      %v1160 = vmax.f32 %v1150, 0.0
      %v1161 = vmax.f32 %v1151, 0.0
      %v1162 = vmax.f32 %v1152, 0.0
      %v1163 = vmax.f32 %v1153, 0.0
      %v1164 = vmax.f32 %v1154, 0.0
      %1165 = vst [vmem:[%s309] sm:$0xff] %v1155
      %1166 = vst [vmem:[%s309 + $0x8] sm:$0xff] %v1156
      %1167 = vst [vmem:[%s309 + $0x10] sm:$0xff] %v1157
      %1168 = vst [vmem:[%s309 + $0x18] sm:$0xff] %v1158
      %1169 = vst [vmem:[%s309 + $0x20] sm:$0xff] %v1159
      %1170 = vst [vmem:[%s309 + $0x28] sm:$0xff] %v1160
      %1171 = vst [vmem:[%s309 + $0x30] sm:$0xff] %v1161
      %1172 = vst [vmem:[%s309 + $0x38] sm:$0xff] %v1162
      %1173 = vst [vmem:[%s309 + $0x40] sm:$0xff] %v1163
      %1174 = vst [vmem:[%s309 + $0x48] sm:$0xff] %v1164
      %s1175 = smul.u32 10, %s22
      %p1176 = scmp.lt.s32.totalorder %s21, 1
      %s1177 = scalar_select %p1176, %s21, 1
      %p1178 = scmp.lt.s32.totalorder %s1175, 9
      %s1179 = scalar_select %p1178, %s1175, 9
      %s1180 = smul.addr %s1177, 10
      %s1181 = sadd.s32 %s1179, %s1180
      %s1182 = smul.addr %s1181, 8
      %s1183 = scalar_lea.vmem %s6, %s1182
      // Predicated region
      $region45: #{resnet_block_forward.3} parent=43 // pred_check
        %p1184 = pneg %p187
      $region46: #{resnet_block_forward.3} parent=43 // pred_check_branch
        %1186 = sbr.rel (%p1184) target = $region48
      $region47: #{resnet_block_forward.3} parent=43 // pred_region
        %s1187 = smul.u32 10, %s22
      $region48: #{resnet_block_forward.3} parent=43 // pred_fallthru
        _
    $region44: #{resnet_block_forward.3} parent=5 // pred_fallthru
      _
    %p1188 = scmp.le.s32.totalorder 2, %s12
    // Predicated region
    $region49: #{resnet_block_forward.3} parent=5 // pred_check
      %p1189 = pneg %p1188
    $region50: #{resnet_block_forward.3} parent=5 // pred_check_branch
      %1191 = sbr.rel (%p1189) target = $region52
    $region51: #{resnet_block_forward.3} parent=5 // pred_region
      %s1192 = ssub.s32 %s12, 2
      // Predicated region
      $region53: #{resnet_block_forward.3} parent=51 // pred_check
        %p1193 = pneg %p193
      $region54: #{resnet_block_forward.3} parent=51 // pred_check_branch
        %1195 = sbr.rel (%p1193) target = $region56
      $region55: #{resnet_block_forward.3} parent=51 // pred_region
        %s1196 = smul.u32 10, %s24
        %p1197 = scmp.lt.s32.totalorder %s23, 1
        %s1198 = scalar_select %p1197, %s23, 1
        %p1199 = scmp.lt.s32.totalorder %s1196, 9
        %s1200 = scalar_select %p1199, %s1196, 9
        %s1201 = smul.addr %s1198, 10
        %s1202 = sadd.s32 %s1200, %s1201
        %s1203 = smul.addr %s1202, 8
        %s1204 = scalar_lea.vmem %s6, %s1203
      $region56: #{resnet_block_forward.3} parent=51 // pred_fallthru
        _
    $region52: #{resnet_block_forward.3} parent=5 // pred_fallthru
      _
  $region6: #{resnet_block_forward.3} parent=0 // loop_footer
    %s16 = sadd.s32 1, %s12
  $region7: #{resnet_block_forward.3} parent=0 // loop_footer_branch
    %11 = sbr.rel target = $region3
  $region8: #{resnet_block_forward.3} parent=0 // loop_exit
    _

</llo_original>
